<compile_context>
chip_gen: v5e
topology: v5e:2x2
jax: 0.10.0
libtpu: 0.0.40
codegen_flags: <defaults>
</compile_context>

<pallas_src>
import jax
import jax.numpy as jnp
import numpy as np
from jax import lax
from jax.experimental import pallas as pl
from jax.experimental.pallas import tpu as pltpu

# ---- hyperparameters (seq length 20 forced by Linear(240): 20*(L-8) = 240) ----
EMBED_SIZE = 50
EMBED_DIM = 16
NUM_CLASS = 4
SEQ_LEN = 20
K1, K2 = 5, 5            # conv kernel heights
C1, C2 = 10, 20          # conv output channels
H1 = SEQ_LEN - K1 + 1    # 16
H2 = H1 - K2 + 1         # 12  (20 * 12 = 240 = Linear in_features)
V_PAD = 64               # vocab padded to a nice width for the one-hot gather
F_EMB = SEQ_LEN * EMBED_DIM   # 320  flattened embedded sequence
F1 = H1 * C1                  # 160  flattened conv1 activation
F2 = H2 * C2                  # 240  flattened conv2 activation
F_OH = SEQ_LEN * V_PAD        # 1280 one-hot feature dim
TB_MAX = 1024            # max batch tile (lane dim of the matmul)


def textcnn_kernel(tok_ref, w_ref, b_ref, out_ref):
    # token ids for this batch tile, transposed: (SEQ_LEN, TB) int32
    tok = tok_ref[...]
    tb = tok.shape[-1]

    # one-hot over the padded vocab (VPU): bool compare then a single pack
    vid = lax.broadcasted_iota(jnp.int32, (V_PAD, tb), 0)              # (V, TB)
    onehot = (tok[:, None, :] == vid[None, :, :]).astype(jnp.bfloat16)  # (L,V,TB)
    onehot = onehot.reshape(F_OH, tb)                                   # (1280,TB)

    # entire (linear) network folded into one matmul: logits = W_all @ onehot + b
    logits = jnp.dot(w_ref[...], onehot,
                     preferred_element_type=jnp.float32) + b_ref[...]   # (NC, TB)

    # softmax over classes (sublane axis); lane-dense (NUM_CLASS, TB) store
    m = jnp.max(logits, axis=0, keepdims=True)
    e = jnp.exp(logits - m)
    inv = pl.reciprocal(jnp.sum(e, axis=0, keepdims=True), approx=True)
    out_ref[...] = e * inv


def _conv_as_dense_T(w_k, H, L):
    """Tap weights (K, Cin, Cout) -> dense (H*Cout, L*Cin) so a valid conv over
    a transposed-flattened activation (L*Cin, TB) becomes one matmul."""
    K, Cin, Cout = w_k.shape
    taps = (jnp.arange(L)[None, :, None] ==
            (jnp.arange(H)[:, None, None] + jnp.arange(K)[None, None, :]))
    W = jnp.einsum('hlk,kio->holi', taps.astype(w_k.dtype), w_k)  # (H,Cout,L,Cin)
    return W.reshape(H * Cout, L * Cin)


def _pick_tb(B):
    """Big tiles amortize the ~0.35us grid-step overhead; keep >=2 grid steps
    when the batch allows so v7x's two TensorCores both get work, and never
    pad a tiny batch all the way up to TB_MAX."""
    if B >= 2 * TB_MAX:
        return TB_MAX
    tb = pl.cdiv(pl.cdiv(B, 2), 256) * 256   # aim for ~2 blocks of 256-multiples
    return int(max(256, min(TB_MAX, tb)))


def textcnn_forward(tokens, params):
    emb_table, w1_t, b1, w2_t, b2, wl, bl = params
    B = tokens.shape[0]
    TB = _pick_tb(B)
    B_pad = pl.cdiv(B, TB) * TB

    # ---- wrapper-side fold of the whole linear chain (f32, rounded once) ----
    emb_pad = jnp.zeros((V_PAD, EMBED_DIM), jnp.float32).at[:EMBED_SIZE].set(emb_table)
    emb_big = jnp.kron(jnp.eye(SEQ_LEN, dtype=jnp.float32), emb_pad.T)  # (F_EMB, F_OH)

    w1_k = jnp.transpose(w1_t[:, 0, :, :], (1, 2, 0))        # (K1, D, C1)
    w2_k = jnp.transpose(w2_t[:, :, :, 0], (2, 1, 0))        # (K2, C1, C2)
    w1_d = _conv_as_dense_T(w1_k, H1, SEQ_LEN)               # (F1, F_EMB)
    w2_d = _conv_as_dense_T(w2_k, H2, H1)                    # (F2, F1)
    wl_d = wl.reshape(NUM_CLASS, C2, H2).transpose(0, 2, 1).reshape(NUM_CLASS, F2)

    # W_all = wl_d @ w2_d @ w1_d @ emb_big : (NUM_CLASS, F_OH)
    w_all = wl_d @ (w2_d @ (w1_d @ emb_big))
    # b_all = wl_d @ (w2_d @ b1_tiled + b2_tiled) + bl : (NUM_CLASS, 1)
    b1_c = jnp.tile(b1, H1).reshape(F1, 1)
    b2_c = jnp.tile(b2, H2).reshape(F2, 1)
    b_all = wl_d @ (w2_d @ b1_c + b2_c) + bl.reshape(NUM_CLASS, 1)

    # only token ids (80 B/sample) cross HBM; pad batch, put batch on lanes
    # TODO(synk): token ids are assumed < V_PAD=64 (true for EMBED_SIZE=50);
    #             out-of-range ids would map to an all-zero one-hot column.
    tok_T = jnp.pad(tokens, ((0, B_pad - B), (0, 0))).T.astype(jnp.int32)  # (L, B_pad)

    out = pl.pallas_call(
        textcnn_kernel,
        out_shape=jax.ShapeDtypeStruct((NUM_CLASS, B_pad), jnp.float32),
        grid=(B_pad // TB,),
        in_specs=[
            pl.BlockSpec((SEQ_LEN, TB), lambda b: (0, b)),     # token ids
            pl.BlockSpec((NUM_CLASS, F_OH), lambda b: (0, 0)),  # folded weights
            pl.BlockSpec((NUM_CLASS, 1), lambda b: (0, 0)),     # folded bias
        ],
        out_specs=pl.BlockSpec((NUM_CLASS, TB), lambda b: (0, b)),
        compiler_params=pltpu.CompilerParams(
            dimension_semantics=("parallel",)),   # batch blocks shard across TCs
    )(tok_T, w_all.astype(jnp.bfloat16), b_all.astype(jnp.float32))

    return out[:, :B].T                                      # (B, NUM_CLASS)


def textcnn_reference(tokens, params):
    """Pure-JAX f32 reference mirroring the PyTorch forward (NCHW convs)."""
    emb_table, w1_t, b1, w2_t, b2, wl, bl = params
    emb_x = jnp.take(emb_table, tokens, axis=0)        # (B, L, D)
    x = emb_x[:, None, :, :]                           # (B, 1, L, D) NCHW
    dn = ('NCHW', 'OIHW', 'NCHW')
    out = lax.conv_general_dilated(x, w1_t, (1, 1), 'VALID', dimension_numbers=dn)
    out = out + b1[None, :, None, None]
    out = lax.conv_general_dilated(out, w2_t, (1, 1), 'VALID', dimension_numbers=dn)
    out = out + b2[None, :, None, None]
    flat = out.reshape(out.shape[0], -1)               # (B, 240) channel-major
    logits = flat @ wl.T + bl
    return jax.nn.softmax(logits, axis=-1)


def init_params(key):
    ks = jax.random.split(key, 7)
    emb_table = 0.1 * jax.random.normal(ks[0], (EMBED_SIZE, EMBED_DIM), jnp.float32)
    w1 = 0.1 * jax.random.normal(ks[1], (C1, 1, K1, EMBED_DIM), jnp.float32)
    b1 = 0.1 * jax.random.normal(ks[2], (C1,), jnp.float32)
    w2 = 0.1 * jax.random.normal(ks[3], (C2, C1, K2, 1), jnp.float32)
    b2 = 0.1 * jax.random.normal(ks[4], (C2,), jnp.float32)
    wl = 0.1 * jax.random.normal(ks[5], (NUM_CLASS, C2 * H2), jnp.float32)
    bl = 0.1 * jax.random.normal(ks[6], (NUM_CLASS,), jnp.float32)
    return (emb_table, w1, b1, w2, b2, wl, bl)


if __name__ == "__main__":
    key = jax.random.PRNGKey(0)
    pkey, tkey = jax.random.split(key)
    params = init_params(pkey)

    B = 2
    tokens = jax.random.randint(tkey, (B, SEQ_LEN), 0, EMBED_SIZE, dtype=jnp.int32)

    out = jax.block_until_ready(textcnn_forward(tokens, params))
    ref = jax.block_until_ready(textcnn_reference(tokens, params))

    # bf16 folded weights + approx reciprocal -> loosened tolerance
    np.testing.assert_allclose(np.asarray(out), np.asarray(ref),
                               rtol=5e-2, atol=2e-2)
    assert out.shape == (B, NUM_CLASS)
    print("KERNEL_OK")
</pallas_src>

<mosaic_0001>
module attributes {stable_mosaic.version = 11 : i64} {
  func.func @textcnn_kernel(%arg0: i32, %arg1: memref<20x256xi32, #tpu.memory_space<vmem>>, %arg2: memref<4x1280xbf16, #tpu.memory_space<vmem>>, %arg3: memref<4x1xf32, #tpu.memory_space<vmem>>, %arg4: memref<4x256xf32, #tpu.memory_space<vmem>>) attributes {dimension_semantics = [#tpu.dimension_semantics<parallel>], iteration_bounds = array<i64: 1>, scalar_prefetch = 0 : i64, scratch_operands = 0 : i64, tpu.core_type = #tpu.core_type<tc>, window_params = [{transform_indices = @transform_0, window_bounds = array<i64: 20, 256>}, {pipeline_mode = #tpu.pipeline_mode<synchronous>, transform_indices = @transform_1, window_bounds = array<i64: 4, 1280>}, {pipeline_mode = #tpu.pipeline_mode<synchronous>, transform_indices = @transform_2, window_bounds = array<i64: 4, 1>}, {transform_indices = @transform_3, window_bounds = array<i64: 4, 256>}]} {
    %c0 = arith.constant 0 : index
    %c0_0 = arith.constant 0 : index
    %0 = vector.load %arg1[%c0, %c0_0] : memref<20x256xi32, #tpu.memory_space<vmem>>, vector<20x256xi32>
    %1 = tpu.iota {dimensions = array<i32: 0>} : vector<64x256xi32>
    %2 = vector.shape_cast %0 : vector<20x256xi32> to vector<20x1x256xi32>
    %3 = vector.shape_cast %1 : vector<64x256xi32> to vector<1x64x256xi32>
    %4 = vector.broadcast %2 : vector<20x1x256xi32> to vector<20x64x256xi32>
    %5 = vector.broadcast %3 : vector<1x64x256xi32> to vector<20x64x256xi32>
    %6 = arith.cmpi eq, %4, %5 : vector<20x64x256xi32>
    %7 = arith.extui %6 : vector<20x64x256xi1> to vector<20x64x256xi32>
    %8 = arith.sitofp %7 : vector<20x64x256xi32> to vector<20x64x256xf32>
    %9 = arith.truncf %8 : vector<20x64x256xf32> to vector<20x64x256xbf16>
    %10 = vector.shape_cast %9 : vector<20x64x256xbf16> to vector<1280x256xbf16>
    %c0_1 = arith.constant 0 : index
    %c0_2 = arith.constant 0 : index
    %11 = vector.load %arg2[%c0_1, %c0_2] : memref<4x1280xbf16, #tpu.memory_space<vmem>>, vector<4x1280xbf16>
    %cst = arith.constant dense<0.000000e+00> : vector<4x256xf32>
    %12 = tpu.matmul %11, %10, %cst {dimension_numbers = #tpu.dot_dimension_numbers<[1], [0], [0], [1], [0, 0, 1, 1], [], []>} : vector<4x1280xbf16>, vector<1280x256xbf16>, vector<4x256xf32> -> vector<4x256xf32>
    %c0_3 = arith.constant 0 : index
    %c0_4 = arith.constant 0 : index
    %13 = vector.load %arg3[%c0_3, %c0_4] : memref<4x1xf32, #tpu.memory_space<vmem>>, vector<4x1xf32>
    %14 = vector.broadcast %13 : vector<4x1xf32> to vector<4x256xf32>
    %15 = arith.addf %12, %14 : vector<4x256xf32>
    %cst_5 = arith.constant dense<0xFF800000> : vector<256xf32>
    %16 = vector.multi_reduction <maximumf>, %15, %cst_5 [0] : vector<4x256xf32> to vector<256xf32>
    %17 = vector.shape_cast %16 : vector<256xf32> to vector<1x256xf32>
    %18 = vector.broadcast %17 : vector<1x256xf32> to vector<4x256xf32>
    %19 = arith.subf %15, %18 : vector<4x256xf32>
    %20 = math.exp %19 : vector<4x256xf32>
    %cst_6 = arith.constant dense<0.000000e+00> : vector<256xf32>
    %21 = vector.multi_reduction <add>, %20, %cst_6 [0] : vector<4x256xf32> to vector<256xf32>
    %22 = vector.shape_cast %21 : vector<256xf32> to vector<1x256xf32>
    %23 = tpu.reciprocal %22 {approx = true} : vector<1x256xf32> -> vector<1x256xf32>
    %24 = vector.broadcast %23 : vector<1x256xf32> to vector<4x256xf32>
    %25 = arith.mulf %20, %24 : vector<4x256xf32>
    %c0_7 = arith.constant 0 : index
    %c0_8 = arith.constant 0 : index
    %26 = vector.load %arg4[%c0_7, %c0_8] : memref<4x256xf32, #tpu.memory_space<vmem>>, vector<4x256xf32>
    tpu.vector_store %arg4[%c0_7, %c0_8], %25 {strides = array<i32>} : memref<4x256xf32, #tpu.memory_space<vmem>>, vector<4x256xf32>,
    return
  }
  func.func @transform_0(%arg0: i32) -> (i32, i32) {
    %c0_i32 = arith.constant 0 : i32
    %c0_i32_0 = arith.constant 0 : i32
    return %c0_i32, %arg0 : i32, i32
  }
  func.func @transform_1(%arg0: i32) -> (i32, i32) {
    %c0_i32 = arith.constant 0 : i32
    %c0_i32_0 = arith.constant 0 : i32
    %c0_i32_1 = arith.constant 0 : i32
    return %c0_i32, %c0_i32_0 : i32, i32
  }
  func.func @transform_2(%arg0: i32) -> (i32, i32) {
    %c0_i32 = arith.constant 0 : i32
    %c0_i32_0 = arith.constant 0 : i32
    %c0_i32_1 = arith.constant 0 : i32
    return %c0_i32, %c0_i32_0 : i32, i32
  }
  func.func @transform_3(%arg0: i32) -> (i32, i32) {
    %c0_i32 = arith.constant 0 : i32
    %c0_i32_0 = arith.constant 0 : i32
    return %c0_i32, %arg0 : i32, i32
  }
}

</mosaic_0001>

<llo_original>
// kernel: tpu_custom_call.1
$region0: #{tpu_custom_call.1}
  #allocation0 [shape = 'u32[]', space=smem, size = 0x4, offset = 0x4, fixed_abs, tag = 'smem constant byte address 0x4 - core index']
  #allocation1 [shape = 'u32[72,128]{1,0:T(1,128)}', space=vmem, size = 0x9000, scoped, tag = 'internal scratch']
  %s0 = inlined_call_operand.hbm [shape: s32[20,256], index: 0, kind: input, shape index: {}]
  %s1 = inlined_call_operand.hbm [shape: bf16[4,1280], index: 1, kind: input, shape index: {}]
  %s2 = inlined_call_operand.vmem [shape: f32[4,1], index: 2, kind: input, shape index: {}]
  %s3 = inlined_call_operand.hbm [shape: f32[4,256], index: 3, kind: output, shape index: {}]
  %s4 = sld [smem:[#allocation0]]
  $region30: #{tpu_custom_call.1} parent=0
    _
  %s6 = ssub.s32 1, %s4
  %s7 = scalar_select 0, %s6, %s4
  $region1: #{tpu_custom_call.1} parent=0
    #allocation2 [shape = 'u8[24576]{0}', space=vmem, size = 0x6000, scoped, tag = 'input window, operand 0, single buffered']
    #allocation3 [shape = 's32[1]{0}', space=sflag, size = 0x4, scoped, tag = 'scoped memory for tpu_custom_call.1']
    #allocation4 [shape = 's32[1]{0}', space=sflag, size = 0x4, scoped, tag = 'scoped memory for tpu_custom_call.1']
    #allocation5 [shape = 'u8[10240]{0}', space=vmem, size = 0x2800, scoped, tag = 'input window, operand 1, single buffered']
    #allocation6 [shape = 's32[1]{0}', space=sflag, size = 0x4, scoped, tag = 'scoped memory for tpu_custom_call.1']
    #allocation7 [shape = 'u8[4096]{0}', space=vmem, size = 0x1000, scoped, tag = 'output window, operand 0, single buffered']
    %8 = vsyncpa [#allocation3], 0
    %9 = vsyncpa [#allocation6], 0
    %10 = vsyncpa [#allocation4], 0
    // Predicated region
    $region2: #{tpu_custom_call.1} parent=1 // pred_check
      _
    $region3: #{tpu_custom_call.1} parent=1 // pred_check_branch
      %12 = sbr.rel (0) target = $region5
    $region4: #{tpu_custom_call.1} parent=1 // pred_region
      %14 = vsyncadd [#allocation3], 0
      %s15 = sshll.u32 %s0, 4
      %s16 = int_to_ptr.hbm [resolvable:$true] %s15
      %s17 = sshll.u32 [#allocation2], 4
      %s18 = int_to_ptr.vmem [resolvable:$true] %s17
      %23 = dma.hbm_to_vmem [thread:$0]  %s16, 768, %s18, [#allocation3], 256, 256, 16
    $region5: #{tpu_custom_call.1} parent=1 // pred_fallthru
      _
    // Predicated region
    $region6: #{tpu_custom_call.1} parent=1 // pred_check
      _
    $region7: #{tpu_custom_call.1} parent=1 // pred_check_branch
      %25 = sbr.rel (0) target = $region9
    $region8: #{tpu_custom_call.1} parent=1 // pred_region
      %27 = vsyncadd [#allocation6], 0
      %s29 = sshll.u32 %s1, 4
      %s30 = int_to_ptr.hbm [resolvable:$true] %s29
      %s31 = sshll.u32 [#allocation5], 4
      %s32 = int_to_ptr.vmem [resolvable:$true] %s31
      %34 = dma.hbm_to_vmem [thread:$0]  %s30, 320, %s32, [#allocation6]
    $region9: #{tpu_custom_call.1} parent=1 // pred_fallthru
      _
    // Predicated region
    $region10: #{tpu_custom_call.1} parent=1 // pred_check
      _
    $region11: #{tpu_custom_call.1} parent=1 // pred_check_branch
      %36 = sbr.rel (0) target = $region13
    $region12: #{tpu_custom_call.1} parent=1 // pred_region
      _
    $region13: #{tpu_custom_call.1} parent=1 // pred_fallthru
      _
    // Predicated region
    $region14: #{tpu_custom_call.1} parent=1 // pred_check
      _
    $region15: #{tpu_custom_call.1} parent=1 // pred_check_branch
      %38 = sbr.rel (0) target = $region17
    $region16: #{tpu_custom_call.1} parent=1 // pred_region
      %40 = dma.done [#allocation3], 768
    $region17: #{tpu_custom_call.1} parent=1 // pred_fallthru
      _
    // Predicated region
    $region18: #{tpu_custom_call.1} parent=1 // pred_check
      _
    $region19: #{tpu_custom_call.1} parent=1 // pred_check_branch
      %42 = sbr.rel (0) target = $region21
    $region20: #{tpu_custom_call.1} parent=1 // pred_region
      %44 = dma.done [#allocation6], 320
    $region21: #{tpu_custom_call.1} parent=1 // pred_fallthru
      _
    %v45 = vld [vmem:[#allocation2] sm:$0xff]
    %v46 = vld [vmem:[#allocation2 + $0x8] sm:$0xff]
    %v47 = vld [vmem:[#allocation2 + $0x10] sm:$0xff]
    %v48 = vld [vmem:[#allocation2 + $0x18] sm:$0xff]
    %v49 = vld [vmem:[#allocation2 + $0x20] sm:$0xf]
    %v50 = vld [vmem:[#allocation2 + $0x28] sm:$0xf]
    %v51 = vlaneseq
    %v52 = vshrl.u32 %v51, 7
    %v53 = vadd.s32 %v52, 8
    %v54 = vadd.s32 %v52, 16
    %v55 = vadd.s32 %v52, 24
    %v56 = vadd.s32 %v52, 32
    %v57 = vadd.s32 %v52, 40
    %v58 = vadd.s32 %v52, 48
    %v59 = vadd.s32 %v52, 56
    %v60 = vrot.slane %v46, 7
    %v61 = vrot.slane %v48, 7
    %v62 = vrot.slane %v50, 7
    %vm63 = vcmask 1040384
    %v64 = vsel %vm63, %v45, %v60
    %vm65 = vcmask 1041409
    %v66 = vsel %vm65, %v45, %v60
    %v67 = vrot.slane %v66, 1
    %vm68 = vcmask 1042434
    %v69 = vsel %vm68, %v45, %v60
    %v70 = vrot.slane %v69, 2
    %vm71 = vcmask 1043459
    %v72 = vsel %vm71, %v45, %v60
    %v73 = vrot.slane %v72, 3
    %vm74 = vcmask 1044484
    %v75 = vsel %vm74, %v45, %v60
    %v76 = vrot.slane %v75, 4
    %vm77 = vcmask 1045509
    %v78 = vsel %vm77, %v45, %v60
    %v79 = vrot.slane %v78, 5
    %vm80 = vcmask 1046534
    %v81 = vsel %vm80, %v45, %v60
    %v82 = vrot.slane %v81, 6
    %vm83 = vcmask 1046528
    %v84 = vsel %vm83, %v60, %v45
    %v85 = vrot.slane %v84, 7
    %v86 = vsel %vm63, %v47, %v61
    %v87 = vsel %vm65, %v47, %v61
    %v88 = vrot.slane %v87, 1
    %v89 = vsel %vm68, %v47, %v61
    %v90 = vrot.slane %v89, 2
    %v91 = vsel %vm71, %v47, %v61
    %v92 = vrot.slane %v91, 3
    %v93 = vsel %vm74, %v47, %v61
    %v94 = vrot.slane %v93, 4
    %v95 = vsel %vm77, %v47, %v61
    %v96 = vrot.slane %v95, 5
    %v97 = vsel %vm80, %v47, %v61
    %v98 = vrot.slane %v97, 6
    %v99 = vsel %vm83, %v61, %v47
    %v100 = vrot.slane %v99, 7
    %v101 = vsel %vm63, %v49, %v62
    %v102 = vsel %vm65, %v49, %v62
    %v103 = vrot.slane %v102, 1
    %v104 = vsel %vm68, %v49, %v62
    %v105 = vrot.slane %v104, 2
    %v106 = vsel %vm71, %v49, %v62
    %v107 = vrot.slane %v106, 3
    %v108 = vperm.slane %v64, 0
    %v109 = vperm.slane %v64, 1
    %v110 = vperm.slane %v67, 0
    %v111 = vperm.slane %v67, 1
    %v112 = vperm.slane %v70, 0
    %v113 = vperm.slane %v70, 1
    %v114 = vperm.slane %v73, 0
    %v115 = vperm.slane %v73, 1
    %v116 = vperm.slane %v76, 0
    %v117 = vperm.slane %v76, 1
    %v118 = vperm.slane %v79, 0
    %v119 = vperm.slane %v79, 1
    %v120 = vperm.slane %v82, 0
    %v121 = vperm.slane %v82, 1
    %v122 = vperm.slane %v85, 0
    %v123 = vperm.slane %v85, 1
    %v124 = vperm.slane %v86, 0
    %v125 = vperm.slane %v86, 1
    %v126 = vperm.slane %v88, 0
    %v127 = vperm.slane %v88, 1
    %v128 = vperm.slane %v90, 0
    %v129 = vperm.slane %v90, 1
    %v130 = vperm.slane %v92, 0
    %v131 = vperm.slane %v92, 1
    %v132 = vperm.slane %v94, 0
    %v133 = vperm.slane %v94, 1
    %v134 = vperm.slane %v96, 0
    %v135 = vperm.slane %v96, 1
    %v136 = vperm.slane %v98, 0
    %v137 = vperm.slane %v98, 1
    %v138 = vperm.slane %v100, 0
    %v139 = vperm.slane %v100, 1
    %v140 = vperm.slane %v101, 0
    %v141 = vperm.slane %v101, 1
    %v142 = vperm.slane %v103, 0
    %v143 = vperm.slane %v103, 1
    %v144 = vperm.slane %v105, 0
    %v145 = vperm.slane %v105, 1
    %v146 = vperm.slane %v107, 0
    %v147 = vperm.slane %v107, 1
    %vm148 = vcmp.eq.s32.totalorder %v108, %v52
    %vm149 = vcmp.eq.s32.totalorder %v109, %v52
    %vm150 = vcmp.eq.s32.totalorder %v108, %v53
    %vm151 = vcmp.eq.s32.totalorder %v109, %v53
    %vm152 = vcmp.eq.s32.totalorder %v108, %v54
    %vm153 = vcmp.eq.s32.totalorder %v109, %v54
    %vm154 = vcmp.eq.s32.totalorder %v108, %v55
    %vm155 = vcmp.eq.s32.totalorder %v109, %v55
    %vm156 = vcmp.eq.s32.totalorder %v108, %v56
    %vm157 = vcmp.eq.s32.totalorder %v109, %v56
    %vm158 = vcmp.eq.s32.totalorder %v108, %v57
    %vm159 = vcmp.eq.s32.totalorder %v109, %v57
    %vm160 = vcmp.eq.s32.totalorder %v108, %v58
    %vm161 = vcmp.eq.s32.totalorder %v109, %v58
    %vm162 = vcmp.eq.s32.totalorder %v108, %v59
    %vm163 = vcmp.eq.s32.totalorder %v109, %v59
    %vm164 = vcmp.eq.s32.totalorder %v110, %v52
    %vm165 = vcmp.eq.s32.totalorder %v111, %v52
    %vm166 = vcmp.eq.s32.totalorder %v110, %v53
    %vm167 = vcmp.eq.s32.totalorder %v111, %v53
    %vm168 = vcmp.eq.s32.totalorder %v110, %v54
    %vm169 = vcmp.eq.s32.totalorder %v111, %v54
    %vm170 = vcmp.eq.s32.totalorder %v110, %v55
    %vm171 = vcmp.eq.s32.totalorder %v111, %v55
    %vm172 = vcmp.eq.s32.totalorder %v110, %v56
    %vm173 = vcmp.eq.s32.totalorder %v111, %v56
    %vm174 = vcmp.eq.s32.totalorder %v110, %v57
    %vm175 = vcmp.eq.s32.totalorder %v111, %v57
    %vm176 = vcmp.eq.s32.totalorder %v110, %v58
    %vm177 = vcmp.eq.s32.totalorder %v111, %v58
    %vm178 = vcmp.eq.s32.totalorder %v110, %v59
    %vm179 = vcmp.eq.s32.totalorder %v111, %v59
    %vm180 = vcmp.eq.s32.totalorder %v112, %v52
    %vm181 = vcmp.eq.s32.totalorder %v113, %v52
    %vm182 = vcmp.eq.s32.totalorder %v112, %v53
    %vm183 = vcmp.eq.s32.totalorder %v113, %v53
    %vm184 = vcmp.eq.s32.totalorder %v112, %v54
    %vm185 = vcmp.eq.s32.totalorder %v113, %v54
    %vm186 = vcmp.eq.s32.totalorder %v112, %v55
    %vm187 = vcmp.eq.s32.totalorder %v113, %v55
    %vm188 = vcmp.eq.s32.totalorder %v112, %v56
    %vm189 = vcmp.eq.s32.totalorder %v113, %v56
    %vm190 = vcmp.eq.s32.totalorder %v112, %v57
    %vm191 = vcmp.eq.s32.totalorder %v113, %v57
    %vm192 = vcmp.eq.s32.totalorder %v112, %v58
    %vm193 = vcmp.eq.s32.totalorder %v113, %v58
    %vm194 = vcmp.eq.s32.totalorder %v112, %v59
    %vm195 = vcmp.eq.s32.totalorder %v113, %v59
    %vm196 = vcmp.eq.s32.totalorder %v114, %v52
    %vm197 = vcmp.eq.s32.totalorder %v115, %v52
    %vm198 = vcmp.eq.s32.totalorder %v114, %v53
    %vm199 = vcmp.eq.s32.totalorder %v115, %v53
    %vm200 = vcmp.eq.s32.totalorder %v114, %v54
    %vm201 = vcmp.eq.s32.totalorder %v115, %v54
    %vm202 = vcmp.eq.s32.totalorder %v114, %v55
    %vm203 = vcmp.eq.s32.totalorder %v115, %v55
    %vm204 = vcmp.eq.s32.totalorder %v114, %v56
    %vm205 = vcmp.eq.s32.totalorder %v115, %v56
    %vm206 = vcmp.eq.s32.totalorder %v114, %v57
    %vm207 = vcmp.eq.s32.totalorder %v115, %v57
    %vm208 = vcmp.eq.s32.totalorder %v114, %v58
    %vm209 = vcmp.eq.s32.totalorder %v115, %v58
    %vm210 = vcmp.eq.s32.totalorder %v114, %v59
    %vm211 = vcmp.eq.s32.totalorder %v115, %v59
    %vm212 = vcmp.eq.s32.totalorder %v116, %v52
    %vm213 = vcmp.eq.s32.totalorder %v117, %v52
    %vm214 = vcmp.eq.s32.totalorder %v116, %v53
    %vm215 = vcmp.eq.s32.totalorder %v117, %v53
    %vm216 = vcmp.eq.s32.totalorder %v116, %v54
    %vm217 = vcmp.eq.s32.totalorder %v117, %v54
    %vm218 = vcmp.eq.s32.totalorder %v116, %v55
    %vm219 = vcmp.eq.s32.totalorder %v117, %v55
    %vm220 = vcmp.eq.s32.totalorder %v116, %v56
    %vm221 = vcmp.eq.s32.totalorder %v117, %v56
    %vm222 = vcmp.eq.s32.totalorder %v116, %v57
    %vm223 = vcmp.eq.s32.totalorder %v117, %v57
    %vm224 = vcmp.eq.s32.totalorder %v116, %v58
    %vm225 = vcmp.eq.s32.totalorder %v117, %v58
    %vm226 = vcmp.eq.s32.totalorder %v116, %v59
    %vm227 = vcmp.eq.s32.totalorder %v117, %v59
    %vm228 = vcmp.eq.s32.totalorder %v118, %v52
    %vm229 = vcmp.eq.s32.totalorder %v119, %v52
    %vm230 = vcmp.eq.s32.totalorder %v118, %v53
    %vm231 = vcmp.eq.s32.totalorder %v119, %v53
    %vm232 = vcmp.eq.s32.totalorder %v118, %v54
    %vm233 = vcmp.eq.s32.totalorder %v119, %v54
    %vm234 = vcmp.eq.s32.totalorder %v118, %v55
    %vm235 = vcmp.eq.s32.totalorder %v119, %v55
    %vm236 = vcmp.eq.s32.totalorder %v118, %v56
    %vm237 = vcmp.eq.s32.totalorder %v119, %v56
    %vm238 = vcmp.eq.s32.totalorder %v118, %v57
    %vm239 = vcmp.eq.s32.totalorder %v119, %v57
    %vm240 = vcmp.eq.s32.totalorder %v118, %v58
    %vm241 = vcmp.eq.s32.totalorder %v119, %v58
    %vm242 = vcmp.eq.s32.totalorder %v118, %v59
    %vm243 = vcmp.eq.s32.totalorder %v119, %v59
    %vm244 = vcmp.eq.s32.totalorder %v120, %v52
    %vm245 = vcmp.eq.s32.totalorder %v121, %v52
    %vm246 = vcmp.eq.s32.totalorder %v120, %v53
    %vm247 = vcmp.eq.s32.totalorder %v121, %v53
    %vm248 = vcmp.eq.s32.totalorder %v120, %v54
    %vm249 = vcmp.eq.s32.totalorder %v121, %v54
    %vm250 = vcmp.eq.s32.totalorder %v120, %v55
    %vm251 = vcmp.eq.s32.totalorder %v121, %v55
    %vm252 = vcmp.eq.s32.totalorder %v120, %v56
    %vm253 = vcmp.eq.s32.totalorder %v121, %v56
    %vm254 = vcmp.eq.s32.totalorder %v120, %v57
    %vm255 = vcmp.eq.s32.totalorder %v121, %v57
    %vm256 = vcmp.eq.s32.totalorder %v120, %v58
    %vm257 = vcmp.eq.s32.totalorder %v121, %v58
    %vm258 = vcmp.eq.s32.totalorder %v120, %v59
    %vm259 = vcmp.eq.s32.totalorder %v121, %v59
    %vm260 = vcmp.eq.s32.totalorder %v122, %v52
    %vm261 = vcmp.eq.s32.totalorder %v123, %v52
    %vm262 = vcmp.eq.s32.totalorder %v122, %v53
    %vm263 = vcmp.eq.s32.totalorder %v123, %v53
    %vm264 = vcmp.eq.s32.totalorder %v122, %v54
    %vm265 = vcmp.eq.s32.totalorder %v123, %v54
    %vm266 = vcmp.eq.s32.totalorder %v122, %v55
    %vm267 = vcmp.eq.s32.totalorder %v123, %v55
    %vm268 = vcmp.eq.s32.totalorder %v122, %v56
    %vm269 = vcmp.eq.s32.totalorder %v123, %v56
    %vm270 = vcmp.eq.s32.totalorder %v122, %v57
    %vm271 = vcmp.eq.s32.totalorder %v123, %v57
    %vm272 = vcmp.eq.s32.totalorder %v122, %v58
    %vm273 = vcmp.eq.s32.totalorder %v123, %v58
    %vm274 = vcmp.eq.s32.totalorder %v122, %v59
    %vm275 = vcmp.eq.s32.totalorder %v123, %v59
    %vm276 = vcmp.eq.s32.totalorder %v124, %v52
    %vm277 = vcmp.eq.s32.totalorder %v125, %v52
    %vm278 = vcmp.eq.s32.totalorder %v124, %v53
    %vm279 = vcmp.eq.s32.totalorder %v125, %v53
    %vm280 = vcmp.eq.s32.totalorder %v124, %v54
    %vm281 = vcmp.eq.s32.totalorder %v125, %v54
    %vm282 = vcmp.eq.s32.totalorder %v124, %v55
    %vm283 = vcmp.eq.s32.totalorder %v125, %v55
    %vm284 = vcmp.eq.s32.totalorder %v124, %v56
    %vm285 = vcmp.eq.s32.totalorder %v125, %v56
    %vm286 = vcmp.eq.s32.totalorder %v124, %v57
    %vm287 = vcmp.eq.s32.totalorder %v125, %v57
    %vm288 = vcmp.eq.s32.totalorder %v124, %v58
    %vm289 = vcmp.eq.s32.totalorder %v125, %v58
    %vm290 = vcmp.eq.s32.totalorder %v124, %v59
    %vm291 = vcmp.eq.s32.totalorder %v125, %v59
    %vm292 = vcmp.eq.s32.totalorder %v126, %v52
    %vm293 = vcmp.eq.s32.totalorder %v127, %v52
    %vm294 = vcmp.eq.s32.totalorder %v126, %v53
    %vm295 = vcmp.eq.s32.totalorder %v127, %v53
    %vm296 = vcmp.eq.s32.totalorder %v126, %v54
    %vm297 = vcmp.eq.s32.totalorder %v127, %v54
    %vm298 = vcmp.eq.s32.totalorder %v126, %v55
    %vm299 = vcmp.eq.s32.totalorder %v127, %v55
    %vm300 = vcmp.eq.s32.totalorder %v126, %v56
    %vm301 = vcmp.eq.s32.totalorder %v127, %v56
    %vm302 = vcmp.eq.s32.totalorder %v126, %v57
    %vm303 = vcmp.eq.s32.totalorder %v127, %v57
    %vm304 = vcmp.eq.s32.totalorder %v126, %v58
    %vm305 = vcmp.eq.s32.totalorder %v127, %v58
    %vm306 = vcmp.eq.s32.totalorder %v126, %v59
    %vm307 = vcmp.eq.s32.totalorder %v127, %v59
    %vm308 = vcmp.eq.s32.totalorder %v128, %v52
    %vm309 = vcmp.eq.s32.totalorder %v129, %v52
    %vm310 = vcmp.eq.s32.totalorder %v128, %v53
    %vm311 = vcmp.eq.s32.totalorder %v129, %v53
    %vm312 = vcmp.eq.s32.totalorder %v128, %v54
    %vm313 = vcmp.eq.s32.totalorder %v129, %v54
    %vm314 = vcmp.eq.s32.totalorder %v128, %v55
    %vm315 = vcmp.eq.s32.totalorder %v129, %v55
    %vm316 = vcmp.eq.s32.totalorder %v128, %v56
    %vm317 = vcmp.eq.s32.totalorder %v129, %v56
    %vm318 = vcmp.eq.s32.totalorder %v128, %v57
    %vm319 = vcmp.eq.s32.totalorder %v129, %v57
    %vm320 = vcmp.eq.s32.totalorder %v128, %v58
    %vm321 = vcmp.eq.s32.totalorder %v129, %v58
    %vm322 = vcmp.eq.s32.totalorder %v128, %v59
    %vm323 = vcmp.eq.s32.totalorder %v129, %v59
    %vm324 = vcmp.eq.s32.totalorder %v130, %v52
    %vm325 = vcmp.eq.s32.totalorder %v131, %v52
    %vm326 = vcmp.eq.s32.totalorder %v130, %v53
    %vm327 = vcmp.eq.s32.totalorder %v131, %v53
    %vm328 = vcmp.eq.s32.totalorder %v130, %v54
    %vm329 = vcmp.eq.s32.totalorder %v131, %v54
    %vm330 = vcmp.eq.s32.totalorder %v130, %v55
    %vm331 = vcmp.eq.s32.totalorder %v131, %v55
    %vm332 = vcmp.eq.s32.totalorder %v130, %v56
    %vm333 = vcmp.eq.s32.totalorder %v131, %v56
    %vm334 = vcmp.eq.s32.totalorder %v130, %v57
    %vm335 = vcmp.eq.s32.totalorder %v131, %v57
    %vm336 = vcmp.eq.s32.totalorder %v130, %v58
    %vm337 = vcmp.eq.s32.totalorder %v131, %v58
    %vm338 = vcmp.eq.s32.totalorder %v130, %v59
    %vm339 = vcmp.eq.s32.totalorder %v131, %v59
    %vm340 = vcmp.eq.s32.totalorder %v132, %v52
    %vm341 = vcmp.eq.s32.totalorder %v133, %v52
    %vm342 = vcmp.eq.s32.totalorder %v132, %v53
    %vm343 = vcmp.eq.s32.totalorder %v133, %v53
    %vm344 = vcmp.eq.s32.totalorder %v132, %v54
    %vm345 = vcmp.eq.s32.totalorder %v133, %v54
    %vm346 = vcmp.eq.s32.totalorder %v132, %v55
    %vm347 = vcmp.eq.s32.totalorder %v133, %v55
    %vm348 = vcmp.eq.s32.totalorder %v132, %v56
    %vm349 = vcmp.eq.s32.totalorder %v133, %v56
    %vm350 = vcmp.eq.s32.totalorder %v132, %v57
    %vm351 = vcmp.eq.s32.totalorder %v133, %v57
    %vm352 = vcmp.eq.s32.totalorder %v132, %v58
    %vm353 = vcmp.eq.s32.totalorder %v133, %v58
    %vm354 = vcmp.eq.s32.totalorder %v132, %v59
    %vm355 = vcmp.eq.s32.totalorder %v133, %v59
    %vm356 = vcmp.eq.s32.totalorder %v134, %v52
    %vm357 = vcmp.eq.s32.totalorder %v135, %v52
    %vm358 = vcmp.eq.s32.totalorder %v134, %v53
    %vm359 = vcmp.eq.s32.totalorder %v135, %v53
    %vm360 = vcmp.eq.s32.totalorder %v134, %v54
    %vm361 = vcmp.eq.s32.totalorder %v135, %v54
    %vm362 = vcmp.eq.s32.totalorder %v134, %v55
    %vm363 = vcmp.eq.s32.totalorder %v135, %v55
    %vm364 = vcmp.eq.s32.totalorder %v134, %v56
    %vm365 = vcmp.eq.s32.totalorder %v135, %v56
    %vm366 = vcmp.eq.s32.totalorder %v134, %v57
    %vm367 = vcmp.eq.s32.totalorder %v135, %v57
    %vm368 = vcmp.eq.s32.totalorder %v134, %v58
    %vm369 = vcmp.eq.s32.totalorder %v135, %v58
    %vm370 = vcmp.eq.s32.totalorder %v134, %v59
    %vm371 = vcmp.eq.s32.totalorder %v135, %v59
    %vm372 = vcmp.eq.s32.totalorder %v136, %v52
    %vm373 = vcmp.eq.s32.totalorder %v137, %v52
    %vm374 = vcmp.eq.s32.totalorder %v136, %v53
    %vm375 = vcmp.eq.s32.totalorder %v137, %v53
    %vm376 = vcmp.eq.s32.totalorder %v136, %v54
    %vm377 = vcmp.eq.s32.totalorder %v137, %v54
    %vm378 = vcmp.eq.s32.totalorder %v136, %v55
    %vm379 = vcmp.eq.s32.totalorder %v137, %v55
    %vm380 = vcmp.eq.s32.totalorder %v136, %v56
    %vm381 = vcmp.eq.s32.totalorder %v137, %v56
    %vm382 = vcmp.eq.s32.totalorder %v136, %v57
    %vm383 = vcmp.eq.s32.totalorder %v137, %v57
    %vm384 = vcmp.eq.s32.totalorder %v136, %v58
    %vm385 = vcmp.eq.s32.totalorder %v137, %v58
    %vm386 = vcmp.eq.s32.totalorder %v136, %v59
    %vm387 = vcmp.eq.s32.totalorder %v137, %v59
    %vm388 = vcmp.eq.s32.totalorder %v138, %v52
    %vm389 = vcmp.eq.s32.totalorder %v139, %v52
    %vm390 = vcmp.eq.s32.totalorder %v138, %v53
    %vm391 = vcmp.eq.s32.totalorder %v139, %v53
    %vm392 = vcmp.eq.s32.totalorder %v138, %v54
    %vm393 = vcmp.eq.s32.totalorder %v139, %v54
    %vm394 = vcmp.eq.s32.totalorder %v138, %v55
    %vm395 = vcmp.eq.s32.totalorder %v139, %v55
    %vm396 = vcmp.eq.s32.totalorder %v138, %v56
    %vm397 = vcmp.eq.s32.totalorder %v139, %v56
    %vm398 = vcmp.eq.s32.totalorder %v138, %v57
    %vm399 = vcmp.eq.s32.totalorder %v139, %v57
    %vm400 = vcmp.eq.s32.totalorder %v138, %v58
    %vm401 = vcmp.eq.s32.totalorder %v139, %v58
    %vm402 = vcmp.eq.s32.totalorder %v138, %v59
    %vm403 = vcmp.eq.s32.totalorder %v139, %v59
    %vm404 = vcmp.eq.s32.totalorder %v140, %v52
    %vm405 = vcmp.eq.s32.totalorder %v141, %v52
    %vm406 = vcmp.eq.s32.totalorder %v140, %v53
    %vm407 = vcmp.eq.s32.totalorder %v141, %v53
    %vm408 = vcmp.eq.s32.totalorder %v140, %v54
    %vm409 = vcmp.eq.s32.totalorder %v141, %v54
    %vm410 = vcmp.eq.s32.totalorder %v140, %v55
    %vm411 = vcmp.eq.s32.totalorder %v141, %v55
    %vm412 = vcmp.eq.s32.totalorder %v140, %v56
    %vm413 = vcmp.eq.s32.totalorder %v141, %v56
    %vm414 = vcmp.eq.s32.totalorder %v140, %v57
    %vm415 = vcmp.eq.s32.totalorder %v141, %v57
    %vm416 = vcmp.eq.s32.totalorder %v140, %v58
    %vm417 = vcmp.eq.s32.totalorder %v141, %v58
    %vm418 = vcmp.eq.s32.totalorder %v140, %v59
    %vm419 = vcmp.eq.s32.totalorder %v141, %v59
    %vm420 = vcmp.eq.s32.totalorder %v142, %v52
    %vm421 = vcmp.eq.s32.totalorder %v143, %v52
    %vm422 = vcmp.eq.s32.totalorder %v142, %v53
    %vm423 = vcmp.eq.s32.totalorder %v143, %v53
    %vm424 = vcmp.eq.s32.totalorder %v142, %v54
    %vm425 = vcmp.eq.s32.totalorder %v143, %v54
    %vm426 = vcmp.eq.s32.totalorder %v142, %v55
    %vm427 = vcmp.eq.s32.totalorder %v143, %v55
    %vm428 = vcmp.eq.s32.totalorder %v142, %v56
    %vm429 = vcmp.eq.s32.totalorder %v143, %v56
    %vm430 = vcmp.eq.s32.totalorder %v142, %v57
    %vm431 = vcmp.eq.s32.totalorder %v143, %v57
    %vm432 = vcmp.eq.s32.totalorder %v142, %v58
    %vm433 = vcmp.eq.s32.totalorder %v143, %v58
    %vm434 = vcmp.eq.s32.totalorder %v142, %v59
    %vm435 = vcmp.eq.s32.totalorder %v143, %v59
    %vm436 = vcmp.eq.s32.totalorder %v144, %v52
    %vm437 = vcmp.eq.s32.totalorder %v145, %v52
    %vm438 = vcmp.eq.s32.totalorder %v144, %v53
    %vm439 = vcmp.eq.s32.totalorder %v145, %v53
    %vm440 = vcmp.eq.s32.totalorder %v144, %v54
    %vm441 = vcmp.eq.s32.totalorder %v145, %v54
    %vm442 = vcmp.eq.s32.totalorder %v144, %v55
    %vm443 = vcmp.eq.s32.totalorder %v145, %v55
    %vm444 = vcmp.eq.s32.totalorder %v144, %v56
    %vm445 = vcmp.eq.s32.totalorder %v145, %v56
    %vm446 = vcmp.eq.s32.totalorder %v144, %v57
    %vm447 = vcmp.eq.s32.totalorder %v145, %v57
    %vm448 = vcmp.eq.s32.totalorder %v144, %v58
    %vm449 = vcmp.eq.s32.totalorder %v145, %v58
    %vm450 = vcmp.eq.s32.totalorder %v144, %v59
    %vm451 = vcmp.eq.s32.totalorder %v145, %v59
    %vm452 = vcmp.eq.s32.totalorder %v146, %v52
    %vm453 = vcmp.eq.s32.totalorder %v147, %v52
    %vm454 = vcmp.eq.s32.totalorder %v146, %v53
    %vm455 = vcmp.eq.s32.totalorder %v147, %v53
    %vm456 = vcmp.eq.s32.totalorder %v146, %v54
    %vm457 = vcmp.eq.s32.totalorder %v147, %v54
    %vm458 = vcmp.eq.s32.totalorder %v146, %v55
    %vm459 = vcmp.eq.s32.totalorder %v147, %v55
    %vm460 = vcmp.eq.s32.totalorder %v146, %v56
    %vm461 = vcmp.eq.s32.totalorder %v147, %v56
    %vm462 = vcmp.eq.s32.totalorder %v146, %v57
    %vm463 = vcmp.eq.s32.totalorder %v147, %v57
    %vm464 = vcmp.eq.s32.totalorder %v146, %v58
    %vm465 = vcmp.eq.s32.totalorder %v147, %v58
    %vm466 = vcmp.eq.s32.totalorder %v146, %v59
    %vm467 = vcmp.eq.s32.totalorder %v147, %v59
    %v468 = vsel %vm148, 1, 0
    %v469 = vsel %vm149, 1, 0
    %v470 = vsel %vm150, 1, 0
    %v471 = vsel %vm151, 1, 0
    %v472 = vsel %vm152, 1, 0
    %v473 = vsel %vm153, 1, 0
    %v474 = vsel %vm154, 1, 0
    %v475 = vsel %vm155, 1, 0
    %v476 = vsel %vm156, 1, 0
    %v477 = vsel %vm157, 1, 0
    %v478 = vsel %vm158, 1, 0
    %v479 = vsel %vm159, 1, 0
    %v480 = vsel %vm160, 1, 0
    %v481 = vsel %vm161, 1, 0
    %v482 = vsel %vm162, 1, 0
    %v483 = vsel %vm163, 1, 0
    %v484 = vsel %vm164, 1, 0
    %v485 = vsel %vm165, 1, 0
    %v486 = vsel %vm166, 1, 0
    %v487 = vsel %vm167, 1, 0
    %v488 = vsel %vm168, 1, 0
    %v489 = vsel %vm169, 1, 0
    %v490 = vsel %vm170, 1, 0
    %v491 = vsel %vm171, 1, 0
    %v492 = vsel %vm172, 1, 0
    %v493 = vsel %vm173, 1, 0
    %v494 = vsel %vm174, 1, 0
    %v495 = vsel %vm175, 1, 0
    %v496 = vsel %vm176, 1, 0
    %v497 = vsel %vm177, 1, 0
    %v498 = vsel %vm178, 1, 0
    %v499 = vsel %vm179, 1, 0
    %v500 = vsel %vm180, 1, 0
    %v501 = vsel %vm181, 1, 0
    %v502 = vsel %vm182, 1, 0
    %v503 = vsel %vm183, 1, 0
    %v504 = vsel %vm184, 1, 0
    %v505 = vsel %vm185, 1, 0
    %v506 = vsel %vm186, 1, 0
    %v507 = vsel %vm187, 1, 0
    %v508 = vsel %vm188, 1, 0
    %v509 = vsel %vm189, 1, 0
    %v510 = vsel %vm190, 1, 0
    %v511 = vsel %vm191, 1, 0
    %v512 = vsel %vm192, 1, 0
    %v513 = vsel %vm193, 1, 0
    %v514 = vsel %vm194, 1, 0
    %v515 = vsel %vm195, 1, 0
    %v516 = vsel %vm196, 1, 0
    %v517 = vsel %vm197, 1, 0
    %v518 = vsel %vm198, 1, 0
    %v519 = vsel %vm199, 1, 0
    %v520 = vsel %vm200, 1, 0
    %v521 = vsel %vm201, 1, 0
    %v522 = vsel %vm202, 1, 0
    %v523 = vsel %vm203, 1, 0
    %v524 = vsel %vm204, 1, 0
    %v525 = vsel %vm205, 1, 0
    %v526 = vsel %vm206, 1, 0
    %v527 = vsel %vm207, 1, 0
    %v528 = vsel %vm208, 1, 0
    %v529 = vsel %vm209, 1, 0
    %v530 = vsel %vm210, 1, 0
    %v531 = vsel %vm211, 1, 0
    %v532 = vsel %vm212, 1, 0
    %v533 = vsel %vm213, 1, 0
    %v534 = vsel %vm214, 1, 0
    %v535 = vsel %vm215, 1, 0
    %v536 = vsel %vm216, 1, 0
    %v537 = vsel %vm217, 1, 0
    %v538 = vsel %vm218, 1, 0
    %v539 = vsel %vm219, 1, 0
    %v540 = vsel %vm220, 1, 0
    %v541 = vsel %vm221, 1, 0
    %v542 = vsel %vm222, 1, 0
    %v543 = vsel %vm223, 1, 0
    %v544 = vsel %vm224, 1, 0
    %v545 = vsel %vm225, 1, 0
    %v546 = vsel %vm226, 1, 0
    %v547 = vsel %vm227, 1, 0
    %v548 = vsel %vm228, 1, 0
    %v549 = vsel %vm229, 1, 0
    %v550 = vsel %vm230, 1, 0
    %v551 = vsel %vm231, 1, 0
    %v552 = vsel %vm232, 1, 0
    %v553 = vsel %vm233, 1, 0
    %v554 = vsel %vm234, 1, 0
    %v555 = vsel %vm235, 1, 0
    %v556 = vsel %vm236, 1, 0
    %v557 = vsel %vm237, 1, 0
    %v558 = vsel %vm238, 1, 0
    %v559 = vsel %vm239, 1, 0
    %v560 = vsel %vm240, 1, 0
    %v561 = vsel %vm241, 1, 0
    %v562 = vsel %vm242, 1, 0
    %v563 = vsel %vm243, 1, 0
    %v564 = vsel %vm244, 1, 0
    %v565 = vsel %vm245, 1, 0
    %v566 = vsel %vm246, 1, 0
    %v567 = vsel %vm247, 1, 0
    %v568 = vsel %vm248, 1, 0
    %v569 = vsel %vm249, 1, 0
    %v570 = vsel %vm250, 1, 0
    %v571 = vsel %vm251, 1, 0
    %v572 = vsel %vm252, 1, 0
    %v573 = vsel %vm253, 1, 0
    %v574 = vsel %vm254, 1, 0
    %v575 = vsel %vm255, 1, 0
    %v576 = vsel %vm256, 1, 0
    %v577 = vsel %vm257, 1, 0
    %v578 = vsel %vm258, 1, 0
    %v579 = vsel %vm259, 1, 0
    %v580 = vsel %vm260, 1, 0
    %v581 = vsel %vm261, 1, 0
    %v582 = vsel %vm262, 1, 0
    %v583 = vsel %vm263, 1, 0
    %v584 = vsel %vm264, 1, 0
    %v585 = vsel %vm265, 1, 0
    %v586 = vsel %vm266, 1, 0
    %v587 = vsel %vm267, 1, 0
    %v588 = vsel %vm268, 1, 0
    %v589 = vsel %vm269, 1, 0
    %v590 = vsel %vm270, 1, 0
    %v591 = vsel %vm271, 1, 0
    %v592 = vsel %vm272, 1, 0
    %v593 = vsel %vm273, 1, 0
    %v594 = vsel %vm274, 1, 0
    %v595 = vsel %vm275, 1, 0
    %v596 = vsel %vm276, 1, 0
    %v597 = vsel %vm277, 1, 0
    %v598 = vsel %vm278, 1, 0
    %v599 = vsel %vm279, 1, 0
    %v600 = vsel %vm280, 1, 0
    %v601 = vsel %vm281, 1, 0
    %v602 = vsel %vm282, 1, 0
    %v603 = vsel %vm283, 1, 0
    %v604 = vsel %vm284, 1, 0
    %v605 = vsel %vm285, 1, 0
    %v606 = vsel %vm286, 1, 0
    %v607 = vsel %vm287, 1, 0
    %v608 = vsel %vm288, 1, 0
    %v609 = vsel %vm289, 1, 0
    %v610 = vsel %vm290, 1, 0
    %v611 = vsel %vm291, 1, 0
    %v612 = vsel %vm292, 1, 0
    %v613 = vsel %vm293, 1, 0
    %v614 = vsel %vm294, 1, 0
    %v615 = vsel %vm295, 1, 0
    %v616 = vsel %vm296, 1, 0
    %v617 = vsel %vm297, 1, 0
    %v618 = vsel %vm298, 1, 0
    %v619 = vsel %vm299, 1, 0
    %v620 = vsel %vm300, 1, 0
    %v621 = vsel %vm301, 1, 0
    %v622 = vsel %vm302, 1, 0
    %v623 = vsel %vm303, 1, 0
    %v624 = vsel %vm304, 1, 0
    %v625 = vsel %vm305, 1, 0
    %v626 = vsel %vm306, 1, 0
    %v627 = vsel %vm307, 1, 0
    %v628 = vsel %vm308, 1, 0
    %v629 = vsel %vm309, 1, 0
    %v630 = vsel %vm310, 1, 0
    %v631 = vsel %vm311, 1, 0
    %v632 = vsel %vm312, 1, 0
    %v633 = vsel %vm313, 1, 0
    %v634 = vsel %vm314, 1, 0
    %v635 = vsel %vm315, 1, 0
    %v636 = vsel %vm316, 1, 0
    %v637 = vsel %vm317, 1, 0
    %v638 = vsel %vm318, 1, 0
    %v639 = vsel %vm319, 1, 0
    %v640 = vsel %vm320, 1, 0
    %v641 = vsel %vm321, 1, 0
    %v642 = vsel %vm322, 1, 0
    %v643 = vsel %vm323, 1, 0
    %v644 = vsel %vm324, 1, 0
    %v645 = vsel %vm325, 1, 0
    %v646 = vsel %vm326, 1, 0
    %v647 = vsel %vm327, 1, 0
    %v648 = vsel %vm328, 1, 0
    %v649 = vsel %vm329, 1, 0
    %v650 = vsel %vm330, 1, 0
    %v651 = vsel %vm331, 1, 0
    %v652 = vsel %vm332, 1, 0
    %v653 = vsel %vm333, 1, 0
    %v654 = vsel %vm334, 1, 0
    %v655 = vsel %vm335, 1, 0
    %v656 = vsel %vm336, 1, 0
    %v657 = vsel %vm337, 1, 0
    %v658 = vsel %vm338, 1, 0
    %v659 = vsel %vm339, 1, 0
    %v660 = vsel %vm340, 1, 0
    %v661 = vsel %vm341, 1, 0
    %v662 = vsel %vm342, 1, 0
    %v663 = vsel %vm343, 1, 0
    %v664 = vsel %vm344, 1, 0
    %v665 = vsel %vm345, 1, 0
    %v666 = vsel %vm346, 1, 0
    %v667 = vsel %vm347, 1, 0
    %v668 = vsel %vm348, 1, 0
    %v669 = vsel %vm349, 1, 0
    %v670 = vsel %vm350, 1, 0
    %v671 = vsel %vm351, 1, 0
    %v672 = vsel %vm352, 1, 0
    %v673 = vsel %vm353, 1, 0
    %v674 = vsel %vm354, 1, 0
    %v675 = vsel %vm355, 1, 0
    %v676 = vsel %vm356, 1, 0
    %v677 = vsel %vm357, 1, 0
    %v678 = vsel %vm358, 1, 0
    %v679 = vsel %vm359, 1, 0
    %v680 = vsel %vm360, 1, 0
    %v681 = vsel %vm361, 1, 0
    %v682 = vsel %vm362, 1, 0
    %v683 = vsel %vm363, 1, 0
    %v684 = vsel %vm364, 1, 0
    %v685 = vsel %vm365, 1, 0
    %v686 = vsel %vm366, 1, 0
    %v687 = vsel %vm367, 1, 0
    %v688 = vsel %vm368, 1, 0
    %v689 = vsel %vm369, 1, 0
    %v690 = vsel %vm370, 1, 0
    %v691 = vsel %vm371, 1, 0
    %v692 = vsel %vm372, 1, 0
    %v693 = vsel %vm373, 1, 0
    %v694 = vsel %vm374, 1, 0
    %v695 = vsel %vm375, 1, 0
    %v696 = vsel %vm376, 1, 0
    %v697 = vsel %vm377, 1, 0
    %v698 = vsel %vm378, 1, 0
    %v699 = vsel %vm379, 1, 0
    %v700 = vsel %vm380, 1, 0
    %v701 = vsel %vm381, 1, 0
    %v702 = vsel %vm382, 1, 0
    %v703 = vsel %vm383, 1, 0
    %v704 = vsel %vm384, 1, 0
    %v705 = vsel %vm385, 1, 0
    %v706 = vsel %vm386, 1, 0
    %v707 = vsel %vm387, 1, 0
    %v708 = vsel %vm388, 1, 0
    %v709 = vsel %vm389, 1, 0
    %v710 = vsel %vm390, 1, 0
    %v711 = vsel %vm391, 1, 0
    %v712 = vsel %vm392, 1, 0
    %v713 = vsel %vm393, 1, 0
    %v714 = vsel %vm394, 1, 0
    %v715 = vsel %vm395, 1, 0
    %v716 = vsel %vm396, 1, 0
    %v717 = vsel %vm397, 1, 0
    %v718 = vsel %vm398, 1, 0
    %v719 = vsel %vm399, 1, 0
    %v720 = vsel %vm400, 1, 0
    %v721 = vsel %vm401, 1, 0
    %v722 = vsel %vm402, 1, 0
    %v723 = vsel %vm403, 1, 0
    %v724 = vsel %vm404, 1, 0
    %v725 = vsel %vm405, 1, 0
    %v726 = vsel %vm406, 1, 0
    %v727 = vsel %vm407, 1, 0
    %v728 = vsel %vm408, 1, 0
    %v729 = vsel %vm409, 1, 0
    %v730 = vsel %vm410, 1, 0
    %v731 = vsel %vm411, 1, 0
    %v732 = vsel %vm412, 1, 0
    %v733 = vsel %vm413, 1, 0
    %v734 = vsel %vm414, 1, 0
    %v735 = vsel %vm415, 1, 0
    %v736 = vsel %vm416, 1, 0
    %v737 = vsel %vm417, 1, 0
    %v738 = vsel %vm418, 1, 0
    %v739 = vsel %vm419, 1, 0
    %v740 = vsel %vm420, 1, 0
    %v741 = vsel %vm421, 1, 0
    %v742 = vsel %vm422, 1, 0
    %v743 = vsel %vm423, 1, 0
    %v744 = vsel %vm424, 1, 0
    %v745 = vsel %vm425, 1, 0
    %v746 = vsel %vm426, 1, 0
    %v747 = vsel %vm427, 1, 0
    %v748 = vsel %vm428, 1, 0
    %v749 = vsel %vm429, 1, 0
    %v750 = vsel %vm430, 1, 0
    %v751 = vsel %vm431, 1, 0
    %v752 = vsel %vm432, 1, 0
    %v753 = vsel %vm433, 1, 0
    %v754 = vsel %vm434, 1, 0
    %v755 = vsel %vm435, 1, 0
    %v756 = vsel %vm436, 1, 0
    %v757 = vsel %vm437, 1, 0
    %v758 = vsel %vm438, 1, 0
    %v759 = vsel %vm439, 1, 0
    %v760 = vsel %vm440, 1, 0
    %v761 = vsel %vm441, 1, 0
    %v762 = vsel %vm442, 1, 0
    %v763 = vsel %vm443, 1, 0
    %v764 = vsel %vm444, 1, 0
    %v765 = vsel %vm445, 1, 0
    %v766 = vsel %vm446, 1, 0
    %v767 = vsel %vm447, 1, 0
    %v768 = vsel %vm448, 1, 0
    %v769 = vsel %vm449, 1, 0
    %v770 = vsel %vm450, 1, 0
    %v771 = vsel %vm451, 1, 0
    %v772 = vsel %vm452, 1, 0
    %v773 = vsel %vm453, 1, 0
    %v774 = vsel %vm454, 1, 0
    %v775 = vsel %vm455, 1, 0
    %v776 = vsel %vm456, 1, 0
    %v777 = vsel %vm457, 1, 0
    %v778 = vsel %vm458, 1, 0
    %v779 = vsel %vm459, 1, 0
    %v780 = vsel %vm460, 1, 0
    %v781 = vsel %vm461, 1, 0
    %v782 = vsel %vm462, 1, 0
    %v783 = vsel %vm463, 1, 0
    %v784 = vsel %vm464, 1, 0
    %v785 = vsel %vm465, 1, 0
    %v786 = vsel %vm466, 1, 0
    %v787 = vsel %vm467, 1, 0
    %v788 = vcvt.s32.f32 %v468
    %v789 = vcvt.s32.f32 %v469
    %v790 = vcvt.s32.f32 %v470
    %v791 = vcvt.s32.f32 %v471
    %v792 = vcvt.s32.f32 %v472
    %v793 = vcvt.s32.f32 %v473
    %v794 = vcvt.s32.f32 %v474
    %v795 = vcvt.s32.f32 %v475
    %v796 = vcvt.s32.f32 %v476
    %v797 = vcvt.s32.f32 %v477
    %v798 = vcvt.s32.f32 %v478
    %v799 = vcvt.s32.f32 %v479
    %v800 = vcvt.s32.f32 %v480
    %v801 = vcvt.s32.f32 %v481
    %v802 = vcvt.s32.f32 %v482
    %v803 = vcvt.s32.f32 %v483
    %v804 = vcvt.s32.f32 %v484
    %v805 = vcvt.s32.f32 %v485
    %v806 = vcvt.s32.f32 %v486
    %v807 = vcvt.s32.f32 %v487
    %v808 = vcvt.s32.f32 %v488
    %v809 = vcvt.s32.f32 %v489
    %v810 = vcvt.s32.f32 %v490
    %v811 = vcvt.s32.f32 %v491
    %v812 = vcvt.s32.f32 %v492
    %v813 = vcvt.s32.f32 %v493
    %v814 = vcvt.s32.f32 %v494
    %v815 = vcvt.s32.f32 %v495
    %v816 = vcvt.s32.f32 %v496
    %v817 = vcvt.s32.f32 %v497
    %v818 = vcvt.s32.f32 %v498
    %v819 = vcvt.s32.f32 %v499
    %v820 = vcvt.s32.f32 %v500
    %v821 = vcvt.s32.f32 %v501
    %v822 = vcvt.s32.f32 %v502
    %v823 = vcvt.s32.f32 %v503
    %v824 = vcvt.s32.f32 %v504
    %v825 = vcvt.s32.f32 %v505
    %v826 = vcvt.s32.f32 %v506
    %v827 = vcvt.s32.f32 %v507
    %v828 = vcvt.s32.f32 %v508
    %v829 = vcvt.s32.f32 %v509
    %v830 = vcvt.s32.f32 %v510
    %v831 = vcvt.s32.f32 %v511
    %v832 = vcvt.s32.f32 %v512
    %v833 = vcvt.s32.f32 %v513
    %v834 = vcvt.s32.f32 %v514
    %v835 = vcvt.s32.f32 %v515
    %v836 = vcvt.s32.f32 %v516
    %v837 = vcvt.s32.f32 %v517
    %v838 = vcvt.s32.f32 %v518
    %v839 = vcvt.s32.f32 %v519
    %v840 = vcvt.s32.f32 %v520
    %v841 = vcvt.s32.f32 %v521
    %v842 = vcvt.s32.f32 %v522
    %v843 = vcvt.s32.f32 %v523
    %v844 = vcvt.s32.f32 %v524
    %v845 = vcvt.s32.f32 %v525
    %v846 = vcvt.s32.f32 %v526
    %v847 = vcvt.s32.f32 %v527
    %v848 = vcvt.s32.f32 %v528
    %v849 = vcvt.s32.f32 %v529
    %v850 = vcvt.s32.f32 %v530
    %v851 = vcvt.s32.f32 %v531
    %v852 = vcvt.s32.f32 %v532
    %v853 = vcvt.s32.f32 %v533
    %v854 = vcvt.s32.f32 %v534
    %v855 = vcvt.s32.f32 %v535
    %v856 = vcvt.s32.f32 %v536
    %v857 = vcvt.s32.f32 %v537
    %v858 = vcvt.s32.f32 %v538
    %v859 = vcvt.s32.f32 %v539
    %v860 = vcvt.s32.f32 %v540
    %v861 = vcvt.s32.f32 %v541
    %v862 = vcvt.s32.f32 %v542
    %v863 = vcvt.s32.f32 %v543
    %v864 = vcvt.s32.f32 %v544
    %v865 = vcvt.s32.f32 %v545
    %v866 = vcvt.s32.f32 %v546
    %v867 = vcvt.s32.f32 %v547
    %v868 = vcvt.s32.f32 %v548
    %v869 = vcvt.s32.f32 %v549
    %v870 = vcvt.s32.f32 %v550
    %v871 = vcvt.s32.f32 %v551
    %v872 = vcvt.s32.f32 %v552
    %v873 = vcvt.s32.f32 %v553
    %v874 = vcvt.s32.f32 %v554
    %v875 = vcvt.s32.f32 %v555
    %v876 = vcvt.s32.f32 %v556
    %v877 = vcvt.s32.f32 %v557
    %v878 = vcvt.s32.f32 %v558
    %v879 = vcvt.s32.f32 %v559
    %v880 = vcvt.s32.f32 %v560
    %v881 = vcvt.s32.f32 %v561
    %v882 = vcvt.s32.f32 %v562
    %v883 = vcvt.s32.f32 %v563
    %v884 = vcvt.s32.f32 %v564
    %v885 = vcvt.s32.f32 %v565
    %v886 = vcvt.s32.f32 %v566
    %v887 = vcvt.s32.f32 %v567
    %v888 = vcvt.s32.f32 %v568
    %v889 = vcvt.s32.f32 %v569
    %v890 = vcvt.s32.f32 %v570
    %v891 = vcvt.s32.f32 %v571
    %v892 = vcvt.s32.f32 %v572
    %v893 = vcvt.s32.f32 %v573
    %v894 = vcvt.s32.f32 %v574
    %v895 = vcvt.s32.f32 %v575
    %v896 = vcvt.s32.f32 %v576
    %v897 = vcvt.s32.f32 %v577
    %v898 = vcvt.s32.f32 %v578
    %v899 = vcvt.s32.f32 %v579
    %v900 = vcvt.s32.f32 %v580
    %v901 = vcvt.s32.f32 %v581
    %v902 = vcvt.s32.f32 %v582
    %v903 = vcvt.s32.f32 %v583
    %v904 = vcvt.s32.f32 %v584
    %v905 = vcvt.s32.f32 %v585
    %v906 = vcvt.s32.f32 %v586
    %v907 = vcvt.s32.f32 %v587
    %v908 = vcvt.s32.f32 %v588
    %v909 = vcvt.s32.f32 %v589
    %v910 = vcvt.s32.f32 %v590
    %v911 = vcvt.s32.f32 %v591
    %v912 = vcvt.s32.f32 %v592
    %v913 = vcvt.s32.f32 %v593
    %v914 = vcvt.s32.f32 %v594
    %v915 = vcvt.s32.f32 %v595
    %v916 = vcvt.s32.f32 %v596
    %v917 = vcvt.s32.f32 %v597
    %v918 = vcvt.s32.f32 %v598
    %v919 = vcvt.s32.f32 %v599
    %v920 = vcvt.s32.f32 %v600
    %v921 = vcvt.s32.f32 %v601
    %v922 = vcvt.s32.f32 %v602
    %v923 = vcvt.s32.f32 %v603
    %v924 = vcvt.s32.f32 %v604
    %v925 = vcvt.s32.f32 %v605
    %v926 = vcvt.s32.f32 %v606
    %v927 = vcvt.s32.f32 %v607
    %v928 = vcvt.s32.f32 %v608
    %v929 = vcvt.s32.f32 %v609
    %v930 = vcvt.s32.f32 %v610
    %v931 = vcvt.s32.f32 %v611
    %v932 = vcvt.s32.f32 %v612
    %v933 = vcvt.s32.f32 %v613
    %v934 = vcvt.s32.f32 %v614
    %v935 = vcvt.s32.f32 %v615
    %v936 = vcvt.s32.f32 %v616
    %v937 = vcvt.s32.f32 %v617
    %v938 = vcvt.s32.f32 %v618
    %v939 = vcvt.s32.f32 %v619
    %v940 = vcvt.s32.f32 %v620
    %v941 = vcvt.s32.f32 %v621
    %v942 = vcvt.s32.f32 %v622
    %v943 = vcvt.s32.f32 %v623
    %v944 = vcvt.s32.f32 %v624
    %v945 = vcvt.s32.f32 %v625
    %v946 = vcvt.s32.f32 %v626
    %v947 = vcvt.s32.f32 %v627
    %v948 = vcvt.s32.f32 %v628
    %v949 = vcvt.s32.f32 %v629
    %v950 = vcvt.s32.f32 %v630
    %v951 = vcvt.s32.f32 %v631
    %v952 = vcvt.s32.f32 %v632
    %v953 = vcvt.s32.f32 %v633
    %v954 = vcvt.s32.f32 %v634
    %v955 = vcvt.s32.f32 %v635
    %v956 = vcvt.s32.f32 %v636
    %v957 = vcvt.s32.f32 %v637
    %v958 = vcvt.s32.f32 %v638
    %v959 = vcvt.s32.f32 %v639
    %v960 = vcvt.s32.f32 %v640
    %v961 = vcvt.s32.f32 %v641
    %v962 = vcvt.s32.f32 %v642
    %v963 = vcvt.s32.f32 %v643
    %v964 = vcvt.s32.f32 %v644
    %v965 = vcvt.s32.f32 %v645
    %v966 = vcvt.s32.f32 %v646
    %v967 = vcvt.s32.f32 %v647
    %v968 = vcvt.s32.f32 %v648
    %v969 = vcvt.s32.f32 %v649
    %v970 = vcvt.s32.f32 %v650
    %v971 = vcvt.s32.f32 %v651
    %v972 = vcvt.s32.f32 %v652
    %v973 = vcvt.s32.f32 %v653
    %v974 = vcvt.s32.f32 %v654
    %v975 = vcvt.s32.f32 %v655
    %v976 = vcvt.s32.f32 %v656
    %v977 = vcvt.s32.f32 %v657
    %v978 = vcvt.s32.f32 %v658
    %v979 = vcvt.s32.f32 %v659
    %v980 = vcvt.s32.f32 %v660
    %v981 = vcvt.s32.f32 %v661
    %v982 = vcvt.s32.f32 %v662
    %v983 = vcvt.s32.f32 %v663
    %v984 = vcvt.s32.f32 %v664
    %v985 = vcvt.s32.f32 %v665
    %v986 = vcvt.s32.f32 %v666
    %v987 = vcvt.s32.f32 %v667
    %v988 = vcvt.s32.f32 %v668
    %v989 = vcvt.s32.f32 %v669
    %v990 = vcvt.s32.f32 %v670
    %v991 = vcvt.s32.f32 %v671
    %v992 = vcvt.s32.f32 %v672
    %v993 = vcvt.s32.f32 %v673
    %v994 = vcvt.s32.f32 %v674
    %v995 = vcvt.s32.f32 %v675
    %v996 = vcvt.s32.f32 %v676
    %v997 = vcvt.s32.f32 %v677
    %v998 = vcvt.s32.f32 %v678
    %v999 = vcvt.s32.f32 %v679
    %v1000 = vcvt.s32.f32 %v680
    %v1001 = vcvt.s32.f32 %v681
    %v1002 = vcvt.s32.f32 %v682
    %v1003 = vcvt.s32.f32 %v683
    %v1004 = vcvt.s32.f32 %v684
    %v1005 = vcvt.s32.f32 %v685
    %v1006 = vcvt.s32.f32 %v686
    %v1007 = vcvt.s32.f32 %v687
    %v1008 = vcvt.s32.f32 %v688
    %v1009 = vcvt.s32.f32 %v689
    %v1010 = vcvt.s32.f32 %v690
    %v1011 = vcvt.s32.f32 %v691
    %v1012 = vcvt.s32.f32 %v692
    %v1013 = vcvt.s32.f32 %v693
    %v1014 = vcvt.s32.f32 %v694
    %v1015 = vcvt.s32.f32 %v695
    %v1016 = vcvt.s32.f32 %v696
    %v1017 = vcvt.s32.f32 %v697
    %v1018 = vcvt.s32.f32 %v698
    %v1019 = vcvt.s32.f32 %v699
    %v1020 = vcvt.s32.f32 %v700
    %v1021 = vcvt.s32.f32 %v701
    %v1022 = vcvt.s32.f32 %v702
    %v1023 = vcvt.s32.f32 %v703
    %v1024 = vcvt.s32.f32 %v704
    %v1025 = vcvt.s32.f32 %v705
    %v1026 = vcvt.s32.f32 %v706
    %v1027 = vcvt.s32.f32 %v707
    %v1028 = vcvt.s32.f32 %v708
    %v1029 = vcvt.s32.f32 %v709
    %v1030 = vcvt.s32.f32 %v710
    %v1031 = vcvt.s32.f32 %v711
    %v1032 = vcvt.s32.f32 %v712
    %v1033 = vcvt.s32.f32 %v713
    %v1034 = vcvt.s32.f32 %v714
    %v1035 = vcvt.s32.f32 %v715
    %v1036 = vcvt.s32.f32 %v716
    %v1037 = vcvt.s32.f32 %v717
    %v1038 = vcvt.s32.f32 %v718
    %v1039 = vcvt.s32.f32 %v719
    %v1040 = vcvt.s32.f32 %v720
    %v1041 = vcvt.s32.f32 %v721
    %v1042 = vcvt.s32.f32 %v722
    %v1043 = vcvt.s32.f32 %v723
    %v1044 = vcvt.s32.f32 %v724
    %v1045 = vcvt.s32.f32 %v725
    %v1046 = vcvt.s32.f32 %v726
    %v1047 = vcvt.s32.f32 %v727
    %v1048 = vcvt.s32.f32 %v728
    %v1049 = vcvt.s32.f32 %v729
    %v1050 = vcvt.s32.f32 %v730
    %v1051 = vcvt.s32.f32 %v731
    %v1052 = vcvt.s32.f32 %v732
    %v1053 = vcvt.s32.f32 %v733
    %v1054 = vcvt.s32.f32 %v734
    %v1055 = vcvt.s32.f32 %v735
    %v1056 = vcvt.s32.f32 %v736
    %v1057 = vcvt.s32.f32 %v737
    %v1058 = vcvt.s32.f32 %v738
    %v1059 = vcvt.s32.f32 %v739
    %v1060 = vcvt.s32.f32 %v740
    %v1061 = vcvt.s32.f32 %v741
    %v1062 = vcvt.s32.f32 %v742
    %v1063 = vcvt.s32.f32 %v743
    %v1064 = vcvt.s32.f32 %v744
    %v1065 = vcvt.s32.f32 %v745
    %v1066 = vcvt.s32.f32 %v746
    %v1067 = vcvt.s32.f32 %v747
    %v1068 = vcvt.s32.f32 %v748
    %v1069 = vcvt.s32.f32 %v749
    %v1070 = vcvt.s32.f32 %v750
    %v1071 = vcvt.s32.f32 %v751
    %v1072 = vcvt.s32.f32 %v752
    %v1073 = vcvt.s32.f32 %v753
    %v1074 = vcvt.s32.f32 %v754
    %v1075 = vcvt.s32.f32 %v755
    %v1076 = vcvt.s32.f32 %v756
    %v1077 = vcvt.s32.f32 %v757
    %v1078 = vcvt.s32.f32 %v758
    %v1079 = vcvt.s32.f32 %v759
    %v1080 = vcvt.s32.f32 %v760
    %v1081 = vcvt.s32.f32 %v761
    %v1082 = vcvt.s32.f32 %v762
    %v1083 = vcvt.s32.f32 %v763
    %v1084 = vcvt.s32.f32 %v764
    %v1085 = vcvt.s32.f32 %v765
    %v1086 = vcvt.s32.f32 %v766
    %v1087 = vcvt.s32.f32 %v767
    %v1088 = vcvt.s32.f32 %v768
    %v1089 = vcvt.s32.f32 %v769
    %v1090 = vcvt.s32.f32 %v770
    %v1091 = vcvt.s32.f32 %v771
    %v1092 = vcvt.s32.f32 %v772
    %v1093 = vcvt.s32.f32 %v773
    %v1094 = vcvt.s32.f32 %v774
    %v1095 = vcvt.s32.f32 %v775
    %v1096 = vcvt.s32.f32 %v776
    %v1097 = vcvt.s32.f32 %v777
    %v1098 = vcvt.s32.f32 %v778
    %v1099 = vcvt.s32.f32 %v779
    %v1100 = vcvt.s32.f32 %v780
    %v1101 = vcvt.s32.f32 %v781
    %v1102 = vcvt.s32.f32 %v782
    %v1103 = vcvt.s32.f32 %v783
    %v1104 = vcvt.s32.f32 %v784
    %v1105 = vcvt.s32.f32 %v785
    %v1106 = vcvt.s32.f32 %v786
    %v1107 = vcvt.s32.f32 %v787
    %v1108 = vpack.c.bf16 %v789, %v788
    %v1109 = vpack.c.bf16 %v791, %v790
    %v1110 = vpack.c.bf16 %v793, %v792
    %v1111 = vpack.c.bf16 %v795, %v794
    %v1112 = vpack.c.bf16 %v797, %v796
    %v1113 = vpack.c.bf16 %v799, %v798
    %v1114 = vpack.c.bf16 %v801, %v800
    %v1115 = vpack.c.bf16 %v803, %v802
    %v1116 = vpack.c.bf16 %v805, %v804
    %v1117 = vpack.c.bf16 %v807, %v806
    %v1118 = vpack.c.bf16 %v809, %v808
    %v1119 = vpack.c.bf16 %v811, %v810
    %v1120 = vpack.c.bf16 %v813, %v812
    %v1121 = vpack.c.bf16 %v815, %v814
    %v1122 = vpack.c.bf16 %v817, %v816
    %v1123 = vpack.c.bf16 %v819, %v818
    %v1124 = vpack.c.bf16 %v821, %v820
    %v1125 = vpack.c.bf16 %v823, %v822
    %v1126 = vpack.c.bf16 %v825, %v824
    %v1127 = vpack.c.bf16 %v827, %v826
    %v1128 = vpack.c.bf16 %v829, %v828
    %v1129 = vpack.c.bf16 %v831, %v830
    %v1130 = vpack.c.bf16 %v833, %v832
    %v1131 = vpack.c.bf16 %v835, %v834
    %v1132 = vpack.c.bf16 %v837, %v836
    %v1133 = vpack.c.bf16 %v839, %v838
    %v1134 = vpack.c.bf16 %v841, %v840
    %v1135 = vpack.c.bf16 %v843, %v842
    %v1136 = vpack.c.bf16 %v845, %v844
    %v1137 = vpack.c.bf16 %v847, %v846
    %v1138 = vpack.c.bf16 %v849, %v848
    %v1139 = vpack.c.bf16 %v851, %v850
    %v1140 = vpack.c.bf16 %v853, %v852
    %v1141 = vpack.c.bf16 %v855, %v854
    %v1142 = vpack.c.bf16 %v857, %v856
    %v1143 = vpack.c.bf16 %v859, %v858
    %v1144 = vpack.c.bf16 %v861, %v860
    %v1145 = vpack.c.bf16 %v863, %v862
    %v1146 = vpack.c.bf16 %v865, %v864
    %v1147 = vpack.c.bf16 %v867, %v866
    %v1148 = vpack.c.bf16 %v869, %v868
    %v1149 = vpack.c.bf16 %v871, %v870
    %v1150 = vpack.c.bf16 %v873, %v872
    %v1151 = vpack.c.bf16 %v875, %v874
    %v1152 = vpack.c.bf16 %v877, %v876
    %v1153 = vpack.c.bf16 %v879, %v878
    %v1154 = vpack.c.bf16 %v881, %v880
    %v1155 = vpack.c.bf16 %v883, %v882
    %v1156 = vpack.c.bf16 %v885, %v884
    %v1157 = vpack.c.bf16 %v887, %v886
    %v1158 = vpack.c.bf16 %v889, %v888
    %v1159 = vpack.c.bf16 %v891, %v890
    %v1160 = vpack.c.bf16 %v893, %v892
    %v1161 = vpack.c.bf16 %v895, %v894
    %v1162 = vpack.c.bf16 %v897, %v896
    %v1163 = vpack.c.bf16 %v899, %v898
    %v1164 = vpack.c.bf16 %v901, %v900
    %v1165 = vpack.c.bf16 %v903, %v902
    %v1166 = vpack.c.bf16 %v905, %v904
    %v1167 = vpack.c.bf16 %v907, %v906
    %v1168 = vpack.c.bf16 %v909, %v908
    %v1169 = vpack.c.bf16 %v911, %v910
    %v1170 = vpack.c.bf16 %v913, %v912
    %v1171 = vpack.c.bf16 %v915, %v914
    %v1172 = vpack.c.bf16 %v917, %v916
    %v1173 = vpack.c.bf16 %v919, %v918
    %v1174 = vpack.c.bf16 %v921, %v920
    %v1175 = vpack.c.bf16 %v923, %v922
    %v1176 = vpack.c.bf16 %v925, %v924
    %v1177 = vpack.c.bf16 %v927, %v926
    %v1178 = vpack.c.bf16 %v929, %v928
    %v1179 = vpack.c.bf16 %v931, %v930
    %v1180 = vpack.c.bf16 %v933, %v932
    %v1181 = vpack.c.bf16 %v935, %v934
    %v1182 = vpack.c.bf16 %v937, %v936
    %v1183 = vpack.c.bf16 %v939, %v938
    %v1184 = vpack.c.bf16 %v941, %v940
    %v1185 = vpack.c.bf16 %v943, %v942
    %v1186 = vpack.c.bf16 %v945, %v944
    %v1187 = vpack.c.bf16 %v947, %v946
    %v1188 = vpack.c.bf16 %v949, %v948
    %v1189 = vpack.c.bf16 %v951, %v950
    %v1190 = vpack.c.bf16 %v953, %v952
    %v1191 = vpack.c.bf16 %v955, %v954
    %v1192 = vpack.c.bf16 %v957, %v956
    %v1193 = vpack.c.bf16 %v959, %v958
    %v1194 = vpack.c.bf16 %v961, %v960
    %v1195 = vpack.c.bf16 %v963, %v962
    %v1196 = vpack.c.bf16 %v965, %v964
    %v1197 = vpack.c.bf16 %v967, %v966
    %v1198 = vpack.c.bf16 %v969, %v968
    %v1199 = vpack.c.bf16 %v971, %v970
    %v1200 = vpack.c.bf16 %v973, %v972
    %v1201 = vpack.c.bf16 %v975, %v974
    %v1202 = vpack.c.bf16 %v977, %v976
    %v1203 = vpack.c.bf16 %v979, %v978
    %v1204 = vpack.c.bf16 %v981, %v980
    %v1205 = vpack.c.bf16 %v983, %v982
    %v1206 = vpack.c.bf16 %v985, %v984
    %v1207 = vpack.c.bf16 %v987, %v986
    %v1208 = vpack.c.bf16 %v989, %v988
    %v1209 = vpack.c.bf16 %v991, %v990
    %v1210 = vpack.c.bf16 %v993, %v992
    %v1211 = vpack.c.bf16 %v995, %v994
    %v1212 = vpack.c.bf16 %v997, %v996
    %v1213 = vpack.c.bf16 %v999, %v998
    %v1214 = vpack.c.bf16 %v1001, %v1000
    %v1215 = vpack.c.bf16 %v1003, %v1002
    %v1216 = vpack.c.bf16 %v1005, %v1004
    %v1217 = vpack.c.bf16 %v1007, %v1006
    %v1218 = vpack.c.bf16 %v1009, %v1008
    %v1219 = vpack.c.bf16 %v1011, %v1010
    %v1220 = vpack.c.bf16 %v1013, %v1012
    %v1221 = vpack.c.bf16 %v1015, %v1014
    %v1222 = vpack.c.bf16 %v1017, %v1016
    %v1223 = vpack.c.bf16 %v1019, %v1018
    %v1224 = vpack.c.bf16 %v1021, %v1020
    %v1225 = vpack.c.bf16 %v1023, %v1022
    %v1226 = vpack.c.bf16 %v1025, %v1024
    %v1227 = vpack.c.bf16 %v1027, %v1026
    %v1228 = vpack.c.bf16 %v1029, %v1028
    %v1229 = vpack.c.bf16 %v1031, %v1030
    %v1230 = vpack.c.bf16 %v1033, %v1032
    %v1231 = vpack.c.bf16 %v1035, %v1034
    %v1232 = vpack.c.bf16 %v1037, %v1036
    %v1233 = vpack.c.bf16 %v1039, %v1038
    %v1234 = vpack.c.bf16 %v1041, %v1040
    %v1235 = vpack.c.bf16 %v1043, %v1042
    %v1236 = vpack.c.bf16 %v1045, %v1044
    %v1237 = vpack.c.bf16 %v1047, %v1046
    %v1238 = vpack.c.bf16 %v1049, %v1048
    %v1239 = vpack.c.bf16 %v1051, %v1050
    %v1240 = vpack.c.bf16 %v1053, %v1052
    %v1241 = vpack.c.bf16 %v1055, %v1054
    %v1242 = vpack.c.bf16 %v1057, %v1056
    %v1243 = vpack.c.bf16 %v1059, %v1058
    %v1244 = vpack.c.bf16 %v1061, %v1060
    %v1245 = vpack.c.bf16 %v1063, %v1062
    %v1246 = vpack.c.bf16 %v1065, %v1064
    %v1247 = vpack.c.bf16 %v1067, %v1066
    %v1248 = vpack.c.bf16 %v1069, %v1068
    %v1249 = vpack.c.bf16 %v1071, %v1070
    %v1250 = vpack.c.bf16 %v1073, %v1072
    %v1251 = vpack.c.bf16 %v1075, %v1074
    %v1252 = vpack.c.bf16 %v1077, %v1076
    %v1253 = vpack.c.bf16 %v1079, %v1078
    %v1254 = vpack.c.bf16 %v1081, %v1080
    %v1255 = vpack.c.bf16 %v1083, %v1082
    %v1256 = vpack.c.bf16 %v1085, %v1084
    %v1257 = vpack.c.bf16 %v1087, %v1086
    %v1258 = vpack.c.bf16 %v1089, %v1088
    %v1259 = vpack.c.bf16 %v1091, %v1090
    %v1260 = vpack.c.bf16 %v1093, %v1092
    %v1261 = vpack.c.bf16 %v1095, %v1094
    %v1262 = vpack.c.bf16 %v1097, %v1096
    %v1263 = vpack.c.bf16 %v1099, %v1098
    %v1264 = vpack.c.bf16 %v1101, %v1100
    %v1265 = vpack.c.bf16 %v1103, %v1102
    %v1266 = vpack.c.bf16 %v1105, %v1104
    %v1267 = vpack.c.bf16 %v1107, %v1106
    %v1268 = vld [vmem:[#allocation5] sm:$0xff]
    %v1269 = vld [vmem:[#allocation5 + $0x8] sm:$0xff]
    %v1270 = vld [vmem:[#allocation5 + $0x10] sm:$0xf]
    %v1271 = vld [vmem:[%s2] sm:$0xf]
    %1273 = vset.pattern.permute.xlu0 0
    %1274 = vperm.xlu0 %1273, %v1271
    %v1275 = vpop.permute.xlu0 %1274
    %1278 = vst [vmem:[#allocation1] ss:$4 sm:$0xff] %v1268
    %s1280 = scalar_lea.vmem [#allocation1], 32
    %1281 = vst [vmem:[%s1280] ss:$4 sm:$0xff] %v1269
    %v1282 = vld.sshfl [vmem:[#allocation1] sm:$0xff pattern:$0x73625140]
    %v1283 = vld.sshfl [vmem:[#allocation1 + $0x8] sm:$0xff pattern:$0x73625140]
    %v1284 = vld.sshfl [vmem:[#allocation1 + $0x10] sm:$0xff pattern:$0x73625140]
    %v1285 = vld.sshfl [vmem:[#allocation1 + $0x18] sm:$0xff pattern:$0x73625140]
    %v1286 = vld.sshfl [vmem:[#allocation1 + $0x20] sm:$0xff pattern:$0x73625140]
    %v1287 = vld.sshfl [vmem:[#allocation1 + $0x28] sm:$0xff pattern:$0x73625140]
    %v1288 = vld.sshfl [vmem:[#allocation1 + $0x30] sm:$0xff pattern:$0x73625140]
    %v1289 = vld.sshfl [vmem:[#allocation1 + $0x38] sm:$0xff pattern:$0x73625140]
    %1291 = vst [vmem:[#allocation1] ss:$4 sm:$0xff] %v1270
    %v1292 = vld.sshfl [vmem:[#allocation1] sm:$0xff pattern:$0x73625140]
    %v1293 = vld.sshfl [vmem:[#allocation1 + $0x8] sm:$0xff pattern:$0x73625140]
    %v1464 = vunpack.c.l.b16 %v1108
    %v1465 = vunpack.c.h.b16 %v1108
    %v1466 = vunpack.c.l.b16 %v1109
    %v1467 = vunpack.c.h.b16 %v1109
    %v1468 = vunpack.c.l.b16 %v1110
    %v1469 = vunpack.c.h.b16 %v1110
    %v1470 = vunpack.c.l.b16 %v1111
    %v1471 = vunpack.c.h.b16 %v1111
    %v1472 = vunpack.c.l.b16 %v1112
    %v1473 = vunpack.c.h.b16 %v1112
    %v1474 = vunpack.c.l.b16 %v1113
    %v1475 = vunpack.c.h.b16 %v1113
    %v1476 = vunpack.c.l.b16 %v1114
    %v1477 = vunpack.c.h.b16 %v1114
    %v1478 = vunpack.c.l.b16 %v1115
    %v1479 = vunpack.c.h.b16 %v1115
    %v1480 = vunpack.c.l.b16 %v1116
    %v1481 = vunpack.c.h.b16 %v1116
    %v1482 = vunpack.c.l.b16 %v1117
    %v1483 = vunpack.c.h.b16 %v1117
    %v1484 = vunpack.c.l.b16 %v1118
    %v1485 = vunpack.c.h.b16 %v1118
    %v1486 = vunpack.c.l.b16 %v1119
    %v1487 = vunpack.c.h.b16 %v1119
    %v1488 = vunpack.c.l.b16 %v1120
    %v1489 = vunpack.c.h.b16 %v1120
    %v1490 = vunpack.c.l.b16 %v1121
    %v1491 = vunpack.c.h.b16 %v1121
    %v1492 = vunpack.c.l.b16 %v1122
    %v1493 = vunpack.c.h.b16 %v1122
    %v1494 = vunpack.c.l.b16 %v1123
    %v1495 = vunpack.c.h.b16 %v1123
    %v1496 = vunpack.c.l.b16 %v1124
    %v1497 = vunpack.c.h.b16 %v1124
    %v1498 = vunpack.c.l.b16 %v1125
    %v1499 = vunpack.c.h.b16 %v1125
    %v1500 = vunpack.c.l.b16 %v1126
    %v1501 = vunpack.c.h.b16 %v1126
    %v1502 = vunpack.c.l.b16 %v1127
    %v1503 = vunpack.c.h.b16 %v1127
    %v1504 = vunpack.c.l.b16 %v1128
    %v1505 = vunpack.c.h.b16 %v1128
    %v1506 = vunpack.c.l.b16 %v1129
    %v1507 = vunpack.c.h.b16 %v1129
    %v1508 = vunpack.c.l.b16 %v1130
    %v1509 = vunpack.c.h.b16 %v1130
    %v1510 = vunpack.c.l.b16 %v1131
    %v1511 = vunpack.c.h.b16 %v1131
    %v1512 = vunpack.c.l.b16 %v1132
    %v1513 = vunpack.c.h.b16 %v1132
    %v1514 = vunpack.c.l.b16 %v1133
    %v1515 = vunpack.c.h.b16 %v1133
    %v1516 = vunpack.c.l.b16 %v1134
    %v1517 = vunpack.c.h.b16 %v1134
    %v1518 = vunpack.c.l.b16 %v1135
    %v1519 = vunpack.c.h.b16 %v1135
    %v1520 = vunpack.c.l.b16 %v1136
    %v1521 = vunpack.c.h.b16 %v1136
    %v1522 = vunpack.c.l.b16 %v1137
    %v1523 = vunpack.c.h.b16 %v1137
    %v1524 = vunpack.c.l.b16 %v1138
    %v1525 = vunpack.c.h.b16 %v1138
    %v1526 = vunpack.c.l.b16 %v1139
    %v1527 = vunpack.c.h.b16 %v1139
    %v1528 = vunpack.c.l.b16 %v1140
    %v1529 = vunpack.c.h.b16 %v1140
    %v1530 = vunpack.c.l.b16 %v1141
    %v1531 = vunpack.c.h.b16 %v1141
    %v1532 = vunpack.c.l.b16 %v1142
    %v1533 = vunpack.c.h.b16 %v1142
    %v1534 = vunpack.c.l.b16 %v1143
    %v1535 = vunpack.c.h.b16 %v1143
    %v1536 = vunpack.c.l.b16 %v1144
    %v1537 = vunpack.c.h.b16 %v1144
    %v1538 = vunpack.c.l.b16 %v1145
    %v1539 = vunpack.c.h.b16 %v1145
    %v1540 = vunpack.c.l.b16 %v1146
    %v1541 = vunpack.c.h.b16 %v1146
    %v1542 = vunpack.c.l.b16 %v1147
    %v1543 = vunpack.c.h.b16 %v1147
    %v1544 = vunpack.c.l.b16 %v1148
    %v1545 = vunpack.c.h.b16 %v1148
    %v1546 = vunpack.c.l.b16 %v1149
    %v1547 = vunpack.c.h.b16 %v1149
    %v1548 = vunpack.c.l.b16 %v1150
    %v1549 = vunpack.c.h.b16 %v1150
    %v1550 = vunpack.c.l.b16 %v1151
    %v1551 = vunpack.c.h.b16 %v1151
    %v1552 = vunpack.c.l.b16 %v1152
    %v1553 = vunpack.c.h.b16 %v1152
    %v1554 = vunpack.c.l.b16 %v1153
    %v1555 = vunpack.c.h.b16 %v1153
    %v1556 = vunpack.c.l.b16 %v1154
    %v1557 = vunpack.c.h.b16 %v1154
    %v1558 = vunpack.c.l.b16 %v1155
    %v1559 = vunpack.c.h.b16 %v1155
    %v1560 = vunpack.c.l.b16 %v1156
    %v1561 = vunpack.c.h.b16 %v1156
    %v1562 = vunpack.c.l.b16 %v1157
    %v1563 = vunpack.c.h.b16 %v1157
    %v1564 = vunpack.c.l.b16 %v1158
    %v1565 = vunpack.c.h.b16 %v1158
    %v1566 = vunpack.c.l.b16 %v1159
    %v1567 = vunpack.c.h.b16 %v1159
    %v1568 = vunpack.c.l.b16 %v1160
    %v1569 = vunpack.c.h.b16 %v1160
    %v1570 = vunpack.c.l.b16 %v1161
    %v1571 = vunpack.c.h.b16 %v1161
    %v1572 = vunpack.c.l.b16 %v1162
    %v1573 = vunpack.c.h.b16 %v1162
    %v1574 = vunpack.c.l.b16 %v1163
    %v1575 = vunpack.c.h.b16 %v1163
    %v1576 = vunpack.c.l.b16 %v1164
    %v1577 = vunpack.c.h.b16 %v1164
    %v1578 = vunpack.c.l.b16 %v1165
    %v1579 = vunpack.c.h.b16 %v1165
    %v1580 = vunpack.c.l.b16 %v1166
    %v1581 = vunpack.c.h.b16 %v1166
    %v1582 = vunpack.c.l.b16 %v1167
    %v1583 = vunpack.c.h.b16 %v1167
    %v1584 = vunpack.c.l.b16 %v1168
    %v1585 = vunpack.c.h.b16 %v1168
    %v1586 = vunpack.c.l.b16 %v1169
    %v1587 = vunpack.c.h.b16 %v1169
    %v1588 = vunpack.c.l.b16 %v1170
    %v1589 = vunpack.c.h.b16 %v1170
    %v1590 = vunpack.c.l.b16 %v1171
    %v1591 = vunpack.c.h.b16 %v1171
    %v1592 = vunpack.c.l.b16 %v1172
    %v1593 = vunpack.c.h.b16 %v1172
    %v1594 = vunpack.c.l.b16 %v1173
    %v1595 = vunpack.c.h.b16 %v1173
    %v1596 = vunpack.c.l.b16 %v1174
    %v1597 = vunpack.c.h.b16 %v1174
    %v1598 = vunpack.c.l.b16 %v1175
    %v1599 = vunpack.c.h.b16 %v1175
    %v1600 = vunpack.c.l.b16 %v1176
    %v1601 = vunpack.c.h.b16 %v1176
    %v1602 = vunpack.c.l.b16 %v1177
    %v1603 = vunpack.c.h.b16 %v1177
    %v1604 = vunpack.c.l.b16 %v1178
    %v1605 = vunpack.c.h.b16 %v1178
    %v1606 = vunpack.c.l.b16 %v1179
    %v1607 = vunpack.c.h.b16 %v1179
    %v1608 = vunpack.c.l.b16 %v1180
    %v1609 = vunpack.c.h.b16 %v1180
    %v1610 = vunpack.c.l.b16 %v1181
    %v1611 = vunpack.c.h.b16 %v1181
    %v1612 = vunpack.c.l.b16 %v1182
    %v1613 = vunpack.c.h.b16 %v1182
    %v1614 = vunpack.c.l.b16 %v1183
    %v1615 = vunpack.c.h.b16 %v1183
    %v1616 = vunpack.c.l.b16 %v1184
    %v1617 = vunpack.c.h.b16 %v1184
    %v1618 = vunpack.c.l.b16 %v1185
    %v1619 = vunpack.c.h.b16 %v1185
    %v1620 = vunpack.c.l.b16 %v1186
    %v1621 = vunpack.c.h.b16 %v1186
    %v1622 = vunpack.c.l.b16 %v1187
    %v1623 = vunpack.c.h.b16 %v1187
    %v1624 = vunpack.c.l.b16 %v1188
    %v1625 = vunpack.c.h.b16 %v1188
    %v1626 = vunpack.c.l.b16 %v1189
    %v1627 = vunpack.c.h.b16 %v1189
    %v1628 = vunpack.c.l.b16 %v1190
    %v1629 = vunpack.c.h.b16 %v1190
    %v1630 = vunpack.c.l.b16 %v1191
    %v1631 = vunpack.c.h.b16 %v1191
    %v1632 = vunpack.c.l.b16 %v1192
    %v1633 = vunpack.c.h.b16 %v1192
    %v1634 = vunpack.c.l.b16 %v1193
    %v1635 = vunpack.c.h.b16 %v1193
    %v1636 = vunpack.c.l.b16 %v1194
    %v1637 = vunpack.c.h.b16 %v1194
    %v1638 = vunpack.c.l.b16 %v1195
    %v1639 = vunpack.c.h.b16 %v1195
    %v1640 = vunpack.c.l.b16 %v1196
    %v1641 = vunpack.c.h.b16 %v1196
    %v1642 = vunpack.c.l.b16 %v1197
    %v1643 = vunpack.c.h.b16 %v1197
    %v1644 = vunpack.c.l.b16 %v1198
    %v1645 = vunpack.c.h.b16 %v1198
    %v1646 = vunpack.c.l.b16 %v1199
    %v1647 = vunpack.c.h.b16 %v1199
    %v1648 = vunpack.c.l.b16 %v1200
    %v1649 = vunpack.c.h.b16 %v1200
    %v1650 = vunpack.c.l.b16 %v1201
    %v1651 = vunpack.c.h.b16 %v1201
    %v1652 = vunpack.c.l.b16 %v1202
    %v1653 = vunpack.c.h.b16 %v1202
    %v1654 = vunpack.c.l.b16 %v1203
    %v1655 = vunpack.c.h.b16 %v1203
    %v1656 = vunpack.c.l.b16 %v1204
    %v1657 = vunpack.c.h.b16 %v1204
    %v1658 = vunpack.c.l.b16 %v1205
    %v1659 = vunpack.c.h.b16 %v1205
    %v1660 = vunpack.c.l.b16 %v1206
    %v1661 = vunpack.c.h.b16 %v1206
    %v1662 = vunpack.c.l.b16 %v1207
    %v1663 = vunpack.c.h.b16 %v1207
    %v1664 = vunpack.c.l.b16 %v1208
    %v1665 = vunpack.c.h.b16 %v1208
    %v1666 = vunpack.c.l.b16 %v1209
    %v1667 = vunpack.c.h.b16 %v1209
    %v1668 = vunpack.c.l.b16 %v1210
    %v1669 = vunpack.c.h.b16 %v1210
    %v1670 = vunpack.c.l.b16 %v1211
    %v1671 = vunpack.c.h.b16 %v1211
    %v1672 = vunpack.c.l.b16 %v1212
    %v1673 = vunpack.c.h.b16 %v1212
    %v1674 = vunpack.c.l.b16 %v1213
    %v1675 = vunpack.c.h.b16 %v1213
    %v1676 = vunpack.c.l.b16 %v1214
    %v1677 = vunpack.c.h.b16 %v1214
    %v1678 = vunpack.c.l.b16 %v1215
    %v1679 = vunpack.c.h.b16 %v1215
    %v1680 = vunpack.c.l.b16 %v1216
    %v1681 = vunpack.c.h.b16 %v1216
    %v1682 = vunpack.c.l.b16 %v1217
    %v1683 = vunpack.c.h.b16 %v1217
    %v1684 = vunpack.c.l.b16 %v1218
    %v1685 = vunpack.c.h.b16 %v1218
    %v1686 = vunpack.c.l.b16 %v1219
    %v1687 = vunpack.c.h.b16 %v1219
    %v1688 = vunpack.c.l.b16 %v1220
    %v1689 = vunpack.c.h.b16 %v1220
    %v1690 = vunpack.c.l.b16 %v1221
    %v1691 = vunpack.c.h.b16 %v1221
    %v1692 = vunpack.c.l.b16 %v1222
    %v1693 = vunpack.c.h.b16 %v1222
    %v1694 = vunpack.c.l.b16 %v1223
    %v1695 = vunpack.c.h.b16 %v1223
    %v1696 = vunpack.c.l.b16 %v1224
    %v1697 = vunpack.c.h.b16 %v1224
    %v1698 = vunpack.c.l.b16 %v1225
    %v1699 = vunpack.c.h.b16 %v1225
    %v1700 = vunpack.c.l.b16 %v1226
    %v1701 = vunpack.c.h.b16 %v1226
    %v1702 = vunpack.c.l.b16 %v1227
    %v1703 = vunpack.c.h.b16 %v1227
    %v1704 = vunpack.c.l.b16 %v1228
    %v1705 = vunpack.c.h.b16 %v1228
    %v1706 = vunpack.c.l.b16 %v1229
    %v1707 = vunpack.c.h.b16 %v1229
    %v1708 = vunpack.c.l.b16 %v1230
    %v1709 = vunpack.c.h.b16 %v1230
    %v1710 = vunpack.c.l.b16 %v1231
    %v1711 = vunpack.c.h.b16 %v1231
    %v1712 = vunpack.c.l.b16 %v1232
    %v1713 = vunpack.c.h.b16 %v1232
    %v1714 = vunpack.c.l.b16 %v1233
    %v1715 = vunpack.c.h.b16 %v1233
    %v1716 = vunpack.c.l.b16 %v1234
    %v1717 = vunpack.c.h.b16 %v1234
    %v1718 = vunpack.c.l.b16 %v1235
    %v1719 = vunpack.c.h.b16 %v1235
    %v1720 = vunpack.c.l.b16 %v1236
    %v1721 = vunpack.c.h.b16 %v1236
    %v1722 = vunpack.c.l.b16 %v1237
    %v1723 = vunpack.c.h.b16 %v1237
    %v1724 = vunpack.c.l.b16 %v1238
    %v1725 = vunpack.c.h.b16 %v1238
    %v1726 = vunpack.c.l.b16 %v1239
    %v1727 = vunpack.c.h.b16 %v1239
    %v1728 = vunpack.c.l.b16 %v1240
    %v1729 = vunpack.c.h.b16 %v1240
    %v1730 = vunpack.c.l.b16 %v1241
    %v1731 = vunpack.c.h.b16 %v1241
    %v1732 = vunpack.c.l.b16 %v1242
    %v1733 = vunpack.c.h.b16 %v1242
    %v1734 = vunpack.c.l.b16 %v1243
    %v1735 = vunpack.c.h.b16 %v1243
    %v1736 = vunpack.c.l.b16 %v1244
    %v1737 = vunpack.c.h.b16 %v1244
    %v1738 = vunpack.c.l.b16 %v1245
    %v1739 = vunpack.c.h.b16 %v1245
    %v1740 = vunpack.c.l.b16 %v1246
    %v1741 = vunpack.c.h.b16 %v1246
    %v1742 = vunpack.c.l.b16 %v1247
    %v1743 = vunpack.c.h.b16 %v1247
    %v1744 = vunpack.c.l.b16 %v1248
    %v1745 = vunpack.c.h.b16 %v1248
    %v1746 = vunpack.c.l.b16 %v1249
    %v1747 = vunpack.c.h.b16 %v1249
    %v1748 = vunpack.c.l.b16 %v1250
    %v1749 = vunpack.c.h.b16 %v1250
    %v1750 = vunpack.c.l.b16 %v1251
    %v1751 = vunpack.c.h.b16 %v1251
    %v1752 = vunpack.c.l.b16 %v1252
    %v1753 = vunpack.c.h.b16 %v1252
    %v1754 = vunpack.c.l.b16 %v1253
    %v1755 = vunpack.c.h.b16 %v1253
    %v1756 = vunpack.c.l.b16 %v1254
    %v1757 = vunpack.c.h.b16 %v1254
    %v1758 = vunpack.c.l.b16 %v1255
    %v1759 = vunpack.c.h.b16 %v1255
    %v1760 = vunpack.c.l.b16 %v1256
    %v1761 = vunpack.c.h.b16 %v1256
    %v1762 = vunpack.c.l.b16 %v1257
    %v1763 = vunpack.c.h.b16 %v1257
    %v1764 = vunpack.c.l.b16 %v1258
    %v1765 = vunpack.c.h.b16 %v1258
    %v1766 = vunpack.c.l.b16 %v1259
    %v1767 = vunpack.c.h.b16 %v1259
    %v1768 = vunpack.c.l.b16 %v1260
    %v1769 = vunpack.c.h.b16 %v1260
    %v1770 = vunpack.c.l.b16 %v1261
    %v1771 = vunpack.c.h.b16 %v1261
    %v1772 = vunpack.c.l.b16 %v1262
    %v1773 = vunpack.c.h.b16 %v1262
    %v1774 = vunpack.c.l.b16 %v1263
    %v1775 = vunpack.c.h.b16 %v1263
    %v1776 = vunpack.c.l.b16 %v1264
    %v1777 = vunpack.c.h.b16 %v1264
    %v1778 = vunpack.c.l.b16 %v1265
    %v1779 = vunpack.c.h.b16 %v1265
    %v1780 = vunpack.c.l.b16 %v1266
    %v1781 = vunpack.c.h.b16 %v1266
    %v1782 = vunpack.c.l.b16 %v1267
    %v1783 = vunpack.c.h.b16 %v1267
    %v1784 = vpack.c.b16 %v1466, %v1464
    %v1785 = vpack.c.b16 %v1467, %v1465
    %v1786 = vpack.c.b16 %v1470, %v1468
    %v1787 = vpack.c.b16 %v1471, %v1469
    %v1788 = vpack.c.b16 %v1474, %v1472
    %v1789 = vpack.c.b16 %v1475, %v1473
    %v1790 = vpack.c.b16 %v1478, %v1476
    %v1791 = vpack.c.b16 %v1479, %v1477
    %v1792 = vpack.c.b16 %v1482, %v1480
    %v1793 = vpack.c.b16 %v1483, %v1481
    %v1794 = vpack.c.b16 %v1486, %v1484
    %v1795 = vpack.c.b16 %v1487, %v1485
    %v1796 = vpack.c.b16 %v1490, %v1488
    %v1797 = vpack.c.b16 %v1491, %v1489
    %v1798 = vpack.c.b16 %v1494, %v1492
    %v1799 = vpack.c.b16 %v1495, %v1493
    %v1800 = vpack.c.b16 %v1498, %v1496
    %v1801 = vpack.c.b16 %v1499, %v1497
    %v1802 = vpack.c.b16 %v1502, %v1500
    %v1803 = vpack.c.b16 %v1503, %v1501
    %v1804 = vpack.c.b16 %v1506, %v1504
    %v1805 = vpack.c.b16 %v1507, %v1505
    %v1806 = vpack.c.b16 %v1510, %v1508
    %v1807 = vpack.c.b16 %v1511, %v1509
    %v1808 = vpack.c.b16 %v1514, %v1512
    %v1809 = vpack.c.b16 %v1515, %v1513
    %v1810 = vpack.c.b16 %v1518, %v1516
    %v1811 = vpack.c.b16 %v1519, %v1517
    %v1812 = vpack.c.b16 %v1522, %v1520
    %v1813 = vpack.c.b16 %v1523, %v1521
    %v1814 = vpack.c.b16 %v1526, %v1524
    %v1815 = vpack.c.b16 %v1527, %v1525
    %v1816 = vpack.c.b16 %v1530, %v1528
    %v1817 = vpack.c.b16 %v1531, %v1529
    %v1818 = vpack.c.b16 %v1534, %v1532
    %v1819 = vpack.c.b16 %v1535, %v1533
    %v1820 = vpack.c.b16 %v1538, %v1536
    %v1821 = vpack.c.b16 %v1539, %v1537
    %v1822 = vpack.c.b16 %v1542, %v1540
    %v1823 = vpack.c.b16 %v1543, %v1541
    %v1824 = vpack.c.b16 %v1546, %v1544
    %v1825 = vpack.c.b16 %v1547, %v1545
    %v1826 = vpack.c.b16 %v1550, %v1548
    %v1827 = vpack.c.b16 %v1551, %v1549
    %v1828 = vpack.c.b16 %v1554, %v1552
    %v1829 = vpack.c.b16 %v1555, %v1553
    %v1830 = vpack.c.b16 %v1558, %v1556
    %v1831 = vpack.c.b16 %v1559, %v1557
    %v1832 = vpack.c.b16 %v1562, %v1560
    %v1833 = vpack.c.b16 %v1563, %v1561
    %v1834 = vpack.c.b16 %v1566, %v1564
    %v1835 = vpack.c.b16 %v1567, %v1565
    %v1836 = vpack.c.b16 %v1570, %v1568
    %v1837 = vpack.c.b16 %v1571, %v1569
    %v1838 = vpack.c.b16 %v1574, %v1572
    %v1839 = vpack.c.b16 %v1575, %v1573
    %v1840 = vpack.c.b16 %v1578, %v1576
    %v1841 = vpack.c.b16 %v1579, %v1577
    %v1842 = vpack.c.b16 %v1582, %v1580
    %v1843 = vpack.c.b16 %v1583, %v1581
    %v1844 = vpack.c.b16 %v1586, %v1584
    %v1845 = vpack.c.b16 %v1587, %v1585
    %v1846 = vpack.c.b16 %v1590, %v1588
    %v1847 = vpack.c.b16 %v1591, %v1589
    %v1848 = vpack.c.b16 %v1594, %v1592
    %v1849 = vpack.c.b16 %v1595, %v1593
    %v1850 = vpack.c.b16 %v1598, %v1596
    %v1851 = vpack.c.b16 %v1599, %v1597
    %v1852 = vpack.c.b16 %v1602, %v1600
    %v1853 = vpack.c.b16 %v1603, %v1601
    %v1854 = vpack.c.b16 %v1606, %v1604
    %v1855 = vpack.c.b16 %v1607, %v1605
    %v1856 = vpack.c.b16 %v1610, %v1608
    %v1857 = vpack.c.b16 %v1611, %v1609
    %v1858 = vpack.c.b16 %v1614, %v1612
    %v1859 = vpack.c.b16 %v1615, %v1613
    %v1860 = vpack.c.b16 %v1618, %v1616
    %v1861 = vpack.c.b16 %v1619, %v1617
    %v1862 = vpack.c.b16 %v1622, %v1620
    %v1863 = vpack.c.b16 %v1623, %v1621
    %v1864 = vpack.c.b16 %v1626, %v1624
    %v1865 = vpack.c.b16 %v1627, %v1625
    %v1866 = vpack.c.b16 %v1630, %v1628
    %v1867 = vpack.c.b16 %v1631, %v1629
    %v1868 = vpack.c.b16 %v1634, %v1632
    %v1869 = vpack.c.b16 %v1635, %v1633
    %v1870 = vpack.c.b16 %v1638, %v1636
    %v1871 = vpack.c.b16 %v1639, %v1637
    %v1872 = vpack.c.b16 %v1642, %v1640
    %v1873 = vpack.c.b16 %v1643, %v1641
    %v1874 = vpack.c.b16 %v1646, %v1644
    %v1875 = vpack.c.b16 %v1647, %v1645
    %v1876 = vpack.c.b16 %v1650, %v1648
    %v1877 = vpack.c.b16 %v1651, %v1649
    %v1878 = vpack.c.b16 %v1654, %v1652
    %v1879 = vpack.c.b16 %v1655, %v1653
    %v1880 = vpack.c.b16 %v1658, %v1656
    %v1881 = vpack.c.b16 %v1659, %v1657
    %v1882 = vpack.c.b16 %v1662, %v1660
    %v1883 = vpack.c.b16 %v1663, %v1661
    %v1884 = vpack.c.b16 %v1666, %v1664
    %v1885 = vpack.c.b16 %v1667, %v1665
    %v1886 = vpack.c.b16 %v1670, %v1668
    %v1887 = vpack.c.b16 %v1671, %v1669
    %v1888 = vpack.c.b16 %v1674, %v1672
    %v1889 = vpack.c.b16 %v1675, %v1673
    %v1890 = vpack.c.b16 %v1678, %v1676
    %v1891 = vpack.c.b16 %v1679, %v1677
    %v1892 = vpack.c.b16 %v1682, %v1680
    %v1893 = vpack.c.b16 %v1683, %v1681
    %v1894 = vpack.c.b16 %v1686, %v1684
    %v1895 = vpack.c.b16 %v1687, %v1685
    %v1896 = vpack.c.b16 %v1690, %v1688
    %v1897 = vpack.c.b16 %v1691, %v1689
    %v1898 = vpack.c.b16 %v1694, %v1692
    %v1899 = vpack.c.b16 %v1695, %v1693
    %v1900 = vpack.c.b16 %v1698, %v1696
    %v1901 = vpack.c.b16 %v1699, %v1697
    %v1902 = vpack.c.b16 %v1702, %v1700
    %v1903 = vpack.c.b16 %v1703, %v1701
    %v1904 = vpack.c.b16 %v1706, %v1704
    %v1905 = vpack.c.b16 %v1707, %v1705
    %v1906 = vpack.c.b16 %v1710, %v1708
    %v1907 = vpack.c.b16 %v1711, %v1709
    %v1908 = vpack.c.b16 %v1714, %v1712
    %v1909 = vpack.c.b16 %v1715, %v1713
    %v1910 = vpack.c.b16 %v1718, %v1716
    %v1911 = vpack.c.b16 %v1719, %v1717
    %v1912 = vpack.c.b16 %v1722, %v1720
    %v1913 = vpack.c.b16 %v1723, %v1721
    %v1914 = vpack.c.b16 %v1726, %v1724
    %v1915 = vpack.c.b16 %v1727, %v1725
    %v1916 = vpack.c.b16 %v1730, %v1728
    %v1917 = vpack.c.b16 %v1731, %v1729
    %v1918 = vpack.c.b16 %v1734, %v1732
    %v1919 = vpack.c.b16 %v1735, %v1733
    %v1920 = vpack.c.b16 %v1738, %v1736
    %v1921 = vpack.c.b16 %v1739, %v1737
    %v1922 = vpack.c.b16 %v1742, %v1740
    %v1923 = vpack.c.b16 %v1743, %v1741
    %v1924 = vpack.c.b16 %v1746, %v1744
    %v1925 = vpack.c.b16 %v1747, %v1745
    %v1926 = vpack.c.b16 %v1750, %v1748
    %v1927 = vpack.c.b16 %v1751, %v1749
    %v1928 = vpack.c.b16 %v1754, %v1752
    %v1929 = vpack.c.b16 %v1755, %v1753
    %v1930 = vpack.c.b16 %v1758, %v1756
    %v1931 = vpack.c.b16 %v1759, %v1757
    %v1932 = vpack.c.b16 %v1762, %v1760
    %v1933 = vpack.c.b16 %v1763, %v1761
    %v1934 = vpack.c.b16 %v1766, %v1764
    %v1935 = vpack.c.b16 %v1767, %v1765
    %v1936 = vpack.c.b16 %v1770, %v1768
    %v1937 = vpack.c.b16 %v1771, %v1769
    %v1938 = vpack.c.b16 %v1774, %v1772
    %v1939 = vpack.c.b16 %v1775, %v1773
    %v1940 = vpack.c.b16 %v1778, %v1776
    %v1941 = vpack.c.b16 %v1779, %v1777
    %v1942 = vpack.c.b16 %v1782, %v1780
    %v1943 = vpack.c.b16 %v1783, %v1781
    %2104 = vmatpush.bf16.msra.mxu0 %v1798
    %2105 = vmatpush.bf16.msra.mxu0 %v1796
    %2106 = vmatpush.bf16.msra.mxu0 %v1794
    %2107 = vmatpush.bf16.msra.mxu0 %v1792
    %2108 = vmatpush.bf16.msra.mxu0 %v1790
    %2109 = vmatpush.bf16.msra.mxu0 %v1788
    %2110 = vmatpush.bf16.msra.mxu0 %v1786
    %2111 = vmatpush.bf16.msra.mxu0 %v1784
    %2112 = vmatmul.bf16.gmra.mxu0 %v1282
    %v2113 = vpop.f32.mrf.mxu0
    %v2114 = vadd.f32 %v1275, %v2113
    %v2115 = vpop.f32.mrf.mxu0
    %2116 = vdwg.mxu0
    %2117 = vmatpush.bf16.msra.mxu0 %v1814
    %2118 = vmatpush.bf16.msra.mxu0 %v1812
    %2119 = vmatpush.bf16.msra.mxu0 %v1810
    %2120 = vmatpush.bf16.msra.mxu0 %v1808
    %2121 = vmatpush.bf16.msra.mxu0 %v1806
    %2122 = vmatpush.bf16.msra.mxu0 %v1804
    %2123 = vmatpush.bf16.msra.mxu0 %v1802
    %2124 = vmatpush.bf16.msra.mxu0 %v1800
    %2125 = vmatmul.bf16.gmra.mxu0 %v1283
    %v2126 = vpop.f32.mrf.mxu0
    %v2127 = vadd.f32 %v2114, %v2126
    %v2128 = vpop.f32.mrf.mxu0
    %2129 = vdwg.mxu0
    %2130 = vmatpush.bf16.msra.mxu0 %v1830
    %2131 = vmatpush.bf16.msra.mxu0 %v1828
    %2132 = vmatpush.bf16.msra.mxu0 %v1826
    %2133 = vmatpush.bf16.msra.mxu0 %v1824
    %2134 = vmatpush.bf16.msra.mxu0 %v1822
    %2135 = vmatpush.bf16.msra.mxu0 %v1820
    %2136 = vmatpush.bf16.msra.mxu0 %v1818
    %2137 = vmatpush.bf16.msra.mxu0 %v1816
    %2138 = vmatmul.bf16.gmra.mxu0 %v1284
    %v2139 = vpop.f32.mrf.mxu0
    %v2140 = vadd.f32 %v2127, %v2139
    %v2141 = vpop.f32.mrf.mxu0
    %2142 = vdwg.mxu0
    %2143 = vmatpush.bf16.msra.mxu0 %v1846
    %2144 = vmatpush.bf16.msra.mxu0 %v1844
    %2145 = vmatpush.bf16.msra.mxu0 %v1842
    %2146 = vmatpush.bf16.msra.mxu0 %v1840
    %2147 = vmatpush.bf16.msra.mxu0 %v1838
    %2148 = vmatpush.bf16.msra.mxu0 %v1836
    %2149 = vmatpush.bf16.msra.mxu0 %v1834
    %2150 = vmatpush.bf16.msra.mxu0 %v1832
    %2151 = vmatmul.bf16.gmra.mxu0 %v1285
    %v2152 = vpop.f32.mrf.mxu0
    %v2153 = vadd.f32 %v2140, %v2152
    %v2154 = vpop.f32.mrf.mxu0
    %2155 = vdwg.mxu0
    %2156 = vmatpush.bf16.msra.mxu0 %v1862
    %2157 = vmatpush.bf16.msra.mxu0 %v1860
    %2158 = vmatpush.bf16.msra.mxu0 %v1858
    %2159 = vmatpush.bf16.msra.mxu0 %v1856
    %2160 = vmatpush.bf16.msra.mxu0 %v1854
    %2161 = vmatpush.bf16.msra.mxu0 %v1852
    %2162 = vmatpush.bf16.msra.mxu0 %v1850
    %2163 = vmatpush.bf16.msra.mxu0 %v1848
    %2164 = vmatmul.bf16.gmra.mxu0 %v1286
    %v2165 = vpop.f32.mrf.mxu0
    %v2166 = vadd.f32 %v2153, %v2165
    %v2167 = vpop.f32.mrf.mxu0
    %2168 = vdwg.mxu0
    %2169 = vmatpush.bf16.msra.mxu0 %v1878
    %2170 = vmatpush.bf16.msra.mxu0 %v1876
    %2171 = vmatpush.bf16.msra.mxu0 %v1874
    %2172 = vmatpush.bf16.msra.mxu0 %v1872
    %2173 = vmatpush.bf16.msra.mxu0 %v1870
    %2174 = vmatpush.bf16.msra.mxu0 %v1868
    %2175 = vmatpush.bf16.msra.mxu0 %v1866
    %2176 = vmatpush.bf16.msra.mxu0 %v1864
    %2177 = vmatmul.bf16.gmra.mxu0 %v1287
    %v2178 = vpop.f32.mrf.mxu0
    %v2179 = vadd.f32 %v2166, %v2178
    %v2180 = vpop.f32.mrf.mxu0
    %2181 = vdwg.mxu0
    %2182 = vmatpush.bf16.msra.mxu0 %v1894
    %2183 = vmatpush.bf16.msra.mxu0 %v1892
    %2184 = vmatpush.bf16.msra.mxu0 %v1890
    %2185 = vmatpush.bf16.msra.mxu0 %v1888
    %2186 = vmatpush.bf16.msra.mxu0 %v1886
    %2187 = vmatpush.bf16.msra.mxu0 %v1884
    %2188 = vmatpush.bf16.msra.mxu0 %v1882
    %2189 = vmatpush.bf16.msra.mxu0 %v1880
    %2190 = vmatmul.bf16.gmra.mxu0 %v1288
    %v2191 = vpop.f32.mrf.mxu0
    %v2192 = vadd.f32 %v2179, %v2191
    %v2193 = vpop.f32.mrf.mxu0
    %2194 = vdwg.mxu0
    %2195 = vmatpush.bf16.msra.mxu0 %v1910
    %2196 = vmatpush.bf16.msra.mxu0 %v1908
    %2197 = vmatpush.bf16.msra.mxu0 %v1906
    %2198 = vmatpush.bf16.msra.mxu0 %v1904
    %2199 = vmatpush.bf16.msra.mxu0 %v1902
    %2200 = vmatpush.bf16.msra.mxu0 %v1900
    %2201 = vmatpush.bf16.msra.mxu0 %v1898
    %2202 = vmatpush.bf16.msra.mxu0 %v1896
    %2203 = vmatmul.bf16.gmra.mxu0 %v1289
    %v2204 = vpop.f32.mrf.mxu0
    %v2205 = vadd.f32 %v2192, %v2204
    %v2206 = vpop.f32.mrf.mxu0
    %2207 = vdwg.mxu0
    %2208 = vmatpush.bf16.msra.mxu0 %v1926
    %2209 = vmatpush.bf16.msra.mxu0 %v1924
    %2210 = vmatpush.bf16.msra.mxu0 %v1922
    %2211 = vmatpush.bf16.msra.mxu0 %v1920
    %2212 = vmatpush.bf16.msra.mxu0 %v1918
    %2213 = vmatpush.bf16.msra.mxu0 %v1916
    %2214 = vmatpush.bf16.msra.mxu0 %v1914
    %2215 = vmatpush.bf16.msra.mxu0 %v1912
    %2216 = vmatmul.bf16.gmra.mxu0 %v1292
    %v2217 = vpop.f32.mrf.mxu0
    %v2218 = vadd.f32 %v2205, %v2217
    %v2219 = vpop.f32.mrf.mxu0
    %2220 = vdwg.mxu0
    %2221 = vmatpush.bf16.msra.mxu0 %v1942
    %2222 = vmatpush.bf16.msra.mxu0 %v1940
    %2223 = vmatpush.bf16.msra.mxu0 %v1938
    %2224 = vmatpush.bf16.msra.mxu0 %v1936
    %2225 = vmatpush.bf16.msra.mxu0 %v1934
    %2226 = vmatpush.bf16.msra.mxu0 %v1932
    %2227 = vmatpush.bf16.msra.mxu0 %v1930
    %2228 = vmatpush.bf16.msra.mxu0 %v1928
    %2229 = vmatmul.bf16.gmra.mxu0 %v1293
    %v2230 = vpop.f32.mrf.mxu0
    %v2231 = vadd.f32 %v2218, %v2230
    %v2232 = vpop.f32.mrf.mxu0
    %2233 = vdwg.mxu0
    %2234 = vmatpush.bf16.msra.mxu0 %v1799
    %2235 = vmatpush.bf16.msra.mxu0 %v1797
    %2236 = vmatpush.bf16.msra.mxu0 %v1795
    %2237 = vmatpush.bf16.msra.mxu0 %v1793
    %2238 = vmatpush.bf16.msra.mxu0 %v1791
    %2239 = vmatpush.bf16.msra.mxu0 %v1789
    %2240 = vmatpush.bf16.msra.mxu0 %v1787
    %2241 = vmatpush.bf16.msra.mxu0 %v1785
    %2242 = vmatmul.bf16.gmra.mxu0 %v1282
    %v2243 = vpop.f32.mrf.mxu0
    %v2244 = vadd.f32 %v1275, %v2243
    %v2245 = vpop.f32.mrf.mxu0
    %2246 = vdwg.mxu0
    %2247 = vmatpush.bf16.msra.mxu0 %v1815
    %2248 = vmatpush.bf16.msra.mxu0 %v1813
    %2249 = vmatpush.bf16.msra.mxu0 %v1811
    %2250 = vmatpush.bf16.msra.mxu0 %v1809
    %2251 = vmatpush.bf16.msra.mxu0 %v1807
    %2252 = vmatpush.bf16.msra.mxu0 %v1805
    %2253 = vmatpush.bf16.msra.mxu0 %v1803
    %2254 = vmatpush.bf16.msra.mxu0 %v1801
    %2255 = vmatmul.bf16.gmra.mxu0 %v1283
    %v2256 = vpop.f32.mrf.mxu0
    %v2257 = vadd.f32 %v2244, %v2256
    %v2258 = vpop.f32.mrf.mxu0
    %2259 = vdwg.mxu0
    %2260 = vmatpush.bf16.msra.mxu0 %v1831
    %2261 = vmatpush.bf16.msra.mxu0 %v1829
    %2262 = vmatpush.bf16.msra.mxu0 %v1827
    %2263 = vmatpush.bf16.msra.mxu0 %v1825
    %2264 = vmatpush.bf16.msra.mxu0 %v1823
    %2265 = vmatpush.bf16.msra.mxu0 %v1821
    %2266 = vmatpush.bf16.msra.mxu0 %v1819
    %2267 = vmatpush.bf16.msra.mxu0 %v1817
    %2268 = vmatmul.bf16.gmra.mxu0 %v1284
    %v2269 = vpop.f32.mrf.mxu0
    %v2270 = vadd.f32 %v2257, %v2269
    %v2271 = vpop.f32.mrf.mxu0
    %2272 = vdwg.mxu0
    %2273 = vmatpush.bf16.msra.mxu0 %v1847
    %2274 = vmatpush.bf16.msra.mxu0 %v1845
    %2275 = vmatpush.bf16.msra.mxu0 %v1843
    %2276 = vmatpush.bf16.msra.mxu0 %v1841
    %2277 = vmatpush.bf16.msra.mxu0 %v1839
    %2278 = vmatpush.bf16.msra.mxu0 %v1837
    %2279 = vmatpush.bf16.msra.mxu0 %v1835
    %2280 = vmatpush.bf16.msra.mxu0 %v1833
    %2281 = vmatmul.bf16.gmra.mxu0 %v1285
    %v2282 = vpop.f32.mrf.mxu0
    %v2283 = vadd.f32 %v2270, %v2282
    %v2284 = vpop.f32.mrf.mxu0
    %2285 = vdwg.mxu0
    %2286 = vmatpush.bf16.msra.mxu0 %v1863
    %2287 = vmatpush.bf16.msra.mxu0 %v1861
    %2288 = vmatpush.bf16.msra.mxu0 %v1859
    %2289 = vmatpush.bf16.msra.mxu0 %v1857
    %2290 = vmatpush.bf16.msra.mxu0 %v1855
    %2291 = vmatpush.bf16.msra.mxu0 %v1853
    %2292 = vmatpush.bf16.msra.mxu0 %v1851
    %2293 = vmatpush.bf16.msra.mxu0 %v1849
    %2294 = vmatmul.bf16.gmra.mxu0 %v1286
    %v2295 = vpop.f32.mrf.mxu0
    %v2296 = vadd.f32 %v2283, %v2295
    %v2297 = vpop.f32.mrf.mxu0
    %2298 = vdwg.mxu0
    %2299 = vmatpush.bf16.msra.mxu0 %v1879
    %2300 = vmatpush.bf16.msra.mxu0 %v1877
    %2301 = vmatpush.bf16.msra.mxu0 %v1875
    %2302 = vmatpush.bf16.msra.mxu0 %v1873
    %2303 = vmatpush.bf16.msra.mxu0 %v1871
    %2304 = vmatpush.bf16.msra.mxu0 %v1869
    %2305 = vmatpush.bf16.msra.mxu0 %v1867
    %2306 = vmatpush.bf16.msra.mxu0 %v1865
    %2307 = vmatmul.bf16.gmra.mxu0 %v1287
    %v2308 = vpop.f32.mrf.mxu0
    %v2309 = vadd.f32 %v2296, %v2308
    %v2310 = vpop.f32.mrf.mxu0
    %2311 = vdwg.mxu0
    %2312 = vmatpush.bf16.msra.mxu0 %v1895
    %2313 = vmatpush.bf16.msra.mxu0 %v1893
    %2314 = vmatpush.bf16.msra.mxu0 %v1891
    %2315 = vmatpush.bf16.msra.mxu0 %v1889
    %2316 = vmatpush.bf16.msra.mxu0 %v1887
    %2317 = vmatpush.bf16.msra.mxu0 %v1885
    %2318 = vmatpush.bf16.msra.mxu0 %v1883
    %2319 = vmatpush.bf16.msra.mxu0 %v1881
    %2320 = vmatmul.bf16.gmra.mxu0 %v1288
    %v2321 = vpop.f32.mrf.mxu0
    %v2322 = vadd.f32 %v2309, %v2321
    %v2323 = vpop.f32.mrf.mxu0
    %2324 = vdwg.mxu0
    %2325 = vmatpush.bf16.msra.mxu0 %v1911
    %2326 = vmatpush.bf16.msra.mxu0 %v1909
    %2327 = vmatpush.bf16.msra.mxu0 %v1907
    %2328 = vmatpush.bf16.msra.mxu0 %v1905
    %2329 = vmatpush.bf16.msra.mxu0 %v1903
    %2330 = vmatpush.bf16.msra.mxu0 %v1901
    %2331 = vmatpush.bf16.msra.mxu0 %v1899
    %2332 = vmatpush.bf16.msra.mxu0 %v1897
    %2333 = vmatmul.bf16.gmra.mxu0 %v1289
    %v2334 = vpop.f32.mrf.mxu0
    %v2335 = vadd.f32 %v2322, %v2334
    %v2336 = vpop.f32.mrf.mxu0
    %2337 = vdwg.mxu0
    %2338 = vmatpush.bf16.msra.mxu0 %v1927
    %2339 = vmatpush.bf16.msra.mxu0 %v1925
    %2340 = vmatpush.bf16.msra.mxu0 %v1923
    %2341 = vmatpush.bf16.msra.mxu0 %v1921
    %2342 = vmatpush.bf16.msra.mxu0 %v1919
    %2343 = vmatpush.bf16.msra.mxu0 %v1917
    %2344 = vmatpush.bf16.msra.mxu0 %v1915
    %2345 = vmatpush.bf16.msra.mxu0 %v1913
    %2346 = vmatmul.bf16.gmra.mxu0 %v1292
    %v2347 = vpop.f32.mrf.mxu0
    %v2348 = vadd.f32 %v2335, %v2347
    %v2349 = vpop.f32.mrf.mxu0
    %2350 = vdwg.mxu0
    %2351 = vmatpush.bf16.msra.mxu0 %v1943
    %2352 = vmatpush.bf16.msra.mxu0 %v1941
    %2353 = vmatpush.bf16.msra.mxu0 %v1939
    %2354 = vmatpush.bf16.msra.mxu0 %v1937
    %2355 = vmatpush.bf16.msra.mxu0 %v1935
    %2356 = vmatpush.bf16.msra.mxu0 %v1933
    %2357 = vmatpush.bf16.msra.mxu0 %v1931
    %2358 = vmatpush.bf16.msra.mxu0 %v1929
    %2359 = vmatmul.bf16.gmra.mxu0 %v1293
    %v2360 = vpop.f32.mrf.mxu0
    %v2361 = vadd.f32 %v2348, %v2360
    %v2362 = vpop.f32.mrf.mxu0
    %2363 = vdwg.mxu0
    %vm2364 = vcmask 1043456
    %v2365 = vsel %vm2364, %v2231, -inf
    %v2366 = vrot.slane %v2365, 4
    %v2367 = vmax.f32 %v2365, %v2366
    %v2368 = vrot.slane %v2367, 2
    %v2369 = vmax.f32 %v2367, %v2368
    %v2370 = vrot.slane %v2369, 1
    %v2371 = vmax.f32 %v2369, %v2370
    %v2372 = vsel %vm2364, %v2361, -inf
    %v2373 = vrot.slane %v2372, 4
    %v2374 = vmax.f32 %v2372, %v2373
    %v2375 = vrot.slane %v2374, 2
    %v2376 = vmax.f32 %v2374, %v2375
    %v2377 = vrot.slane %v2376, 1
    %v2378 = vmax.f32 %v2376, %v2377
    %v2379 = vsub.f32 %v2231, %v2371
    %v2380 = vsub.f32 %v2361, %v2378
    %v2381 = vmul.f32 %v2379, 1.442695
    %v2382 = vpow.pop %v2381
    %v2383 = vmul.f32 %v2380, 1.442695
    %v2384 = vpow.pop %v2383
    %v2385 = vsel %vm2364, %v2382, 0.0
    %v2386 = vrot.slane %v2385, 4
    %v2387 = vadd.f32 %v2385, %v2386
    %v2388 = vrot.slane %v2387, 2
    %v2389 = vadd.f32 %v2387, %v2388
    %v2390 = vrot.slane %v2389, 1
    %v2391 = vadd.f32 %v2389, %v2390
    %v2392 = vsel %vm2364, %v2384, 0.0
    %v2393 = vrot.slane %v2392, 4
    %v2394 = vadd.f32 %v2392, %v2393
    %v2395 = vrot.slane %v2394, 2
    %v2396 = vadd.f32 %v2394, %v2395
    %v2397 = vrot.slane %v2396, 1
    %v2398 = vadd.f32 %v2396, %v2397
    %v2399 = vrcp.pop %v2391
    %v2400 = vrcp.pop %v2398
    %v2401 = vmul.f32 %v2382, %v2399
    %v2402 = vmul.f32 %v2384, %v2400
    %v2405 = vrot.slane %v2402, 4
    %v2406 = vsel %vm2364, %v2401, %v2405
    %2408 = vst [vmem:[#allocation7] sm:$0xff] %v2406
    // Predicated region
    $region22: #{tpu_custom_call.1} parent=1 // pred_check
      _
    $region23: #{tpu_custom_call.1} parent=1 // pred_check_branch
      %2410 = sbr.rel (0) target = $region25
    $region24: #{tpu_custom_call.1} parent=1 // pred_region
      %2412 = vsyncadd [#allocation4], 0
      %s2414 = sshll.u32 [#allocation7], 4
      %s2415 = int_to_ptr.vmem [resolvable:$true] %s2414
      %s2416 = sshll.u32 %s3, 4
      %s2417 = int_to_ptr.hbm [resolvable:$true] %s2416
      %2419 = dma.vmem_to_hbm [thread:$0]  %s2415, 128, %s2417, [#allocation4]
    $region25: #{tpu_custom_call.1} parent=1 // pred_fallthru
      _
    // Predicated region
    $region26: #{tpu_custom_call.1} parent=1 // pred_check
      _
    $region27: #{tpu_custom_call.1} parent=1 // pred_check_branch
      %2421 = sbr.rel (0) target = $region29
    $region28: #{tpu_custom_call.1} parent=1 // pred_region
      %2423 = dma.done [#allocation4], 128
    $region29: #{tpu_custom_call.1} parent=1 // pred_fallthru
      _
    %2424 = vsyncpa [#allocation3], 1
    %2425 = vsyncpa [#allocation6], 1
    %2426 = vsyncpa [#allocation4], 1

</llo_original>
